<compile_context>
chip_gen: v7x
topology: tpu7x:2x2x1
jax: 0.10.0
libtpu: 0.0.40
codegen_flags: <defaults>
</compile_context>

<pallas_src>
import functools

import jax
import jax.numpy as jnp
from jax.experimental import pallas as pl
from jax.experimental.pallas import tpu as pltpu

EPS = 1e-5


# ----------------------------- fused Pallas kernel -----------------------------

def _make_fused_kernel(layer_kinds):
    """Build a kernel body that runs the whole encoder+decoder on one batch tile.

    layer_kinds: static tuple of "dense_ln" | "linear" | "linear_sigmoid".
    Ref order: x_ref, *param_refs (flattened per layer), o_ref.
    """

    def kernel(*refs):
        x_ref = refs[0]
        o_ref = refs[-1]
        params = refs[1:-1]

        h = x_ref[...]                                  # bf16 (TB, D_in)
        idx = 0
        for kind in layer_kinds:
            if kind == "dense_ln":
                w_ref, b_ref, g_ref, beta_ref = params[idx:idx + 4]
                idx += 4
                z = jnp.dot(h, w_ref[...], preferred_element_type=jnp.float32)
                z = jnp.maximum(z + b_ref[...], 0.0)    # bias + ReLU (f32)
                # one-pass LayerNorm stats: var = E[z^2] - E[z]^2
                mean = jnp.mean(z, axis=-1, keepdims=True)
                mean_sq = jnp.mean(z * z, axis=-1, keepdims=True)
                var = mean_sq - mean * mean
                zn = (z - mean) * jax.lax.rsqrt(var + EPS)
                # TODO(synk): Dropout is identity (inference mode); training RNG mask not reproduced.
                h = (zn * g_ref[...] + beta_ref[...]).astype(jnp.bfloat16)
            elif kind == "linear":
                w_ref, b_ref = params[idx:idx + 2]
                idx += 2
                z = jnp.dot(h, w_ref[...], preferred_element_type=jnp.float32)
                h = (z + b_ref[...]).astype(jnp.bfloat16)
            else:  # "linear_sigmoid"
                w_ref, b_ref = params[idx:idx + 2]
                idx += 2
                z = jnp.dot(h, w_ref[...], preferred_element_type=jnp.float32)
                z = z + b_ref[...]
                # sigmoid = 1 / (1 + exp(-z)); exp + approx reciprocal ride the EUP slot.
                sig = pl.reciprocal(1.0 + jnp.exp(-z), approx=True)
                h = jnp.minimum(sig, 1.0)               # keep output in [0, 1] exactly
        o_ref[...] = h.astype(o_ref.dtype)

    return kernel


# ------------------------------ wrapper -----------------------------------

def fused_dense_autoencoder(params, x_flat):
    """x_flat: (N, D_in) float32 -> (N, D_out) float32 (sigmoid reconstruction, flat)."""
    layers = params["layers"]                           # list of (kind, param_tuple)
    N, d_in = x_flat.shape
    d_out = layers[-1][1][0].shape[1]

    # Batch tile: multiple of 16 (bf16 sublane packing), capped at 256 so the
    # M-dimension fills the 256-row MXU on v6e/v7x while staying far below the
    # scoped VMEM limit (32 MiB) even on v7x's 64 MiB VMEM.
    TB = 256
    if N < TB:
        TB = max(16, ((N + 15) // 16) * 16)
    n_pad = ((N + TB - 1) // TB) * TB
    if n_pad != N:
        x_flat = jnp.pad(x_flat, ((0, n_pad - N), (0, 0)))

    x_bf16 = x_flat.astype(jnp.bfloat16)                # halve HBM input traffic

    kinds = tuple(k for (k, _) in layers)
    flat_params = [p for (_, ps) in layers for p in ps]

    def resident_spec(arr):
        # Whole-array block, same block for every batch tile -> stays VMEM-resident.
        nd = arr.ndim
        return pl.BlockSpec(arr.shape, lambda i, _nd=nd: (0,) * _nd)

    in_specs = [pl.BlockSpec((TB, d_in), lambda i: (i, 0))]
    in_specs += [resident_spec(p) for p in flat_params]

    out = pl.pallas_call(
        _make_fused_kernel(kinds),
        out_shape=jax.ShapeDtypeStruct((n_pad, d_out), jnp.float32),
        grid=(n_pad // TB,),
        in_specs=in_specs,
        out_specs=pl.BlockSpec((TB, d_out), lambda i: (i, 0)),
        compiler_params=pltpu.CompilerParams(
            dimension_semantics=("parallel",)),
    )(x_bf16, *flat_params)
    return out[:N]


# --------------------------- parameter setup --------------------------------

def _init_linear(key, in_f, out_f):
    """Deterministic init matching nn.Linear shapes; stored as (in, out) for x @ W.

    Weights are kept in bf16 (MXU operands); bias in f32 (added post-accumulation)."""
    kw, kb = jax.random.split(key)
    bound = 1.0 / jnp.sqrt(jnp.float32(in_f))
    w = jax.random.uniform(kw, (in_f, out_f), jnp.float32, -bound, bound)
    b = jax.random.uniform(kb, (1, out_f), jnp.float32, -bound, bound)
    return w.astype(jnp.bfloat16), b


def build_dense_autoencoder_params(
    key,
    input_shape=(4, 16, 16),
    encoder_hidden_layers=(64, 32),
    decoder_hidden_layers=None,
    latent_space_dim=2,
):
    C, H, W = input_shape
    input_size = C * H * W
    if decoder_hidden_layers is None:
        decoder_hidden_layers = tuple(encoder_hidden_layers[::-1])

    layers = []
    keys = jax.random.split(
        key, len(encoder_hidden_layers) + len(decoder_hidden_layers) + 2)
    ki = 0

    # Encoder DenseBlock(s): Linear -> ReLU -> LayerNorm -> Dropout(identity)
    in_f = input_size
    for h in encoder_hidden_layers:
        w, b = _init_linear(keys[ki], in_f, h); ki += 1
        gamma = jnp.ones((1, h), jnp.float32)           # LayerNorm weight init
        beta = jnp.zeros((1, h), jnp.float32)           # LayerNorm bias init
        layers.append(("dense_ln", (w, b, gamma, beta)))
        in_f = h
    # Encoder output layer: Linear(in_f -> latent)
    w, b = _init_linear(keys[ki], in_f, latent_space_dim); ki += 1
    layers.append(("linear", (w, b)))

    # Decoder DenseBlock(s) on latent
    in_f = latent_space_dim
    for h in decoder_hidden_layers:
        w, b = _init_linear(keys[ki], in_f, h); ki += 1
        gamma = jnp.ones((1, h), jnp.float32)
        beta = jnp.zeros((1, h), jnp.float32)
        layers.append(("dense_ln", (w, b, gamma, beta)))
        in_f = h
    # Decoder output layer: Linear(in_f -> C*H*W) + Sigmoid
    w, b = _init_linear(keys[ki], in_f, input_size); ki += 1
    layers.append(("linear_sigmoid", (w, b)))

    return {"layers": layers, "input_shape": input_shape}


# ------------------------------ forward pass --------------------------------

def dense_autoencoder_forward(params, x):
    """x: (N, C, H, W) float32 -> (N, C, H, W) float32 (sigmoid reconstruction)."""
    C, H, W = params["input_shape"]
    N = x.shape[0]

    # nn.Flatten: (N, C, H, W) -> (N, C*H*W), row-major (matches NCHW flatten)
    x_flat = x.reshape(N, C * H * W).astype(jnp.float32)
    y = fused_dense_autoencoder(params, x_flat)         # (N, C*H*W)
    return y.reshape(N, C, H, W)


# --------------------------------- main --------------------------------------

if __name__ == "__main__":
    key = jax.random.PRNGKey(0)
    k_params, k_x = jax.random.split(key)

    input_shape = (4, 16, 16)        # (C, H, W)
    batch = 2
    params = build_dense_autoencoder_params(
        k_params,
        input_shape=input_shape,
        encoder_hidden_layers=(64, 32),
        decoder_hidden_layers=None,   # mirrors encoder: (32, 64)
        latent_space_dim=2,
    )

    x = jax.random.uniform(k_x, (batch,) + input_shape, jnp.float32)

    fwd = jax.jit(functools.partial(dense_autoencoder_forward, params))
    out = fwd(x)
    out = jax.block_until_ready(out)

    assert out.shape == (batch,) + input_shape, out.shape
    assert out.dtype == jnp.float32
    assert bool(jnp.all(jnp.isfinite(out)))
    assert bool(jnp.all((out >= 0.0) & (out <= 1.0)))  # sigmoid output range

    print("KERNEL_OK")
</pallas_src>

<mosaic_0001>
module attributes {stable_mosaic.version = 11 : i64} {
  func.func @kernel(%arg0: i32, %arg1: memref<16x1024xbf16, #tpu.memory_space<vmem>>, %arg2: memref<1024x64xbf16, #tpu.memory_space<vmem>>, %arg3: memref<1x64xf32, #tpu.memory_space<vmem>>, %arg4: memref<1x64xf32, #tpu.memory_space<vmem>>, %arg5: memref<1x64xf32, #tpu.memory_space<vmem>>, %arg6: memref<64x32xbf16, #tpu.memory_space<vmem>>, %arg7: memref<1x32xf32, #tpu.memory_space<vmem>>, %arg8: memref<1x32xf32, #tpu.memory_space<vmem>>, %arg9: memref<1x32xf32, #tpu.memory_space<vmem>>, %arg10: memref<32x2xbf16, #tpu.memory_space<vmem>>, %arg11: memref<1x2xf32, #tpu.memory_space<vmem>>, %arg12: memref<2x32xbf16, #tpu.memory_space<vmem>>, %arg13: memref<1x32xf32, #tpu.memory_space<vmem>>, %arg14: memref<1x32xf32, #tpu.memory_space<vmem>>, %arg15: memref<1x32xf32, #tpu.memory_space<vmem>>, %arg16: memref<32x64xbf16, #tpu.memory_space<vmem>>, %arg17: memref<1x64xf32, #tpu.memory_space<vmem>>, %arg18: memref<1x64xf32, #tpu.memory_space<vmem>>, %arg19: memref<1x64xf32, #tpu.memory_space<vmem>>, %arg20: memref<64x1024xbf16, #tpu.memory_space<vmem>>, %arg21: memref<1x1024xf32, #tpu.memory_space<vmem>>, %arg22: memref<16x1024xf32, #tpu.memory_space<vmem>>) attributes {dimension_semantics = [#tpu.dimension_semantics<parallel>], iteration_bounds = array<i64: 1>, scalar_prefetch = 0 : i64, scratch_operands = 0 : i64, tpu.core_type = #tpu.core_type<tc>, window_params = [{transform_indices = @transform_0, window_bounds = array<i64: 16, 1024>}, {pipeline_mode = #tpu.pipeline_mode<synchronous>, transform_indices = @transform_1, window_bounds = array<i64: 1024, 64>}, {pipeline_mode = #tpu.pipeline_mode<synchronous>, transform_indices = @transform_2, window_bounds = array<i64: 1, 64>}, {pipeline_mode = #tpu.pipeline_mode<synchronous>, transform_indices = @transform_3, window_bounds = array<i64: 1, 64>}, {pipeline_mode = #tpu.pipeline_mode<synchronous>, transform_indices = @transform_4, window_bounds = array<i64: 1, 64>}, {pipeline_mode = #tpu.pipeline_mode<synchronous>, transform_indices = @transform_5, window_bounds = array<i64: 64, 32>}, {pipeline_mode = #tpu.pipeline_mode<synchronous>, transform_indices = @transform_6, window_bounds = array<i64: 1, 32>}, {pipeline_mode = #tpu.pipeline_mode<synchronous>, transform_indices = @transform_7, window_bounds = array<i64: 1, 32>}, {pipeline_mode = #tpu.pipeline_mode<synchronous>, transform_indices = @transform_8, window_bounds = array<i64: 1, 32>}, {pipeline_mode = #tpu.pipeline_mode<synchronous>, transform_indices = @transform_9, window_bounds = array<i64: 32, 2>}, {pipeline_mode = #tpu.pipeline_mode<synchronous>, transform_indices = @transform_10, window_bounds = array<i64: 1, 2>}, {pipeline_mode = #tpu.pipeline_mode<synchronous>, transform_indices = @transform_11, window_bounds = array<i64: 2, 32>}, {pipeline_mode = #tpu.pipeline_mode<synchronous>, transform_indices = @transform_12, window_bounds = array<i64: 1, 32>}, {pipeline_mode = #tpu.pipeline_mode<synchronous>, transform_indices = @transform_13, window_bounds = array<i64: 1, 32>}, {pipeline_mode = #tpu.pipeline_mode<synchronous>, transform_indices = @transform_14, window_bounds = array<i64: 1, 32>}, {pipeline_mode = #tpu.pipeline_mode<synchronous>, transform_indices = @transform_15, window_bounds = array<i64: 32, 64>}, {pipeline_mode = #tpu.pipeline_mode<synchronous>, transform_indices = @transform_16, window_bounds = array<i64: 1, 64>}, {pipeline_mode = #tpu.pipeline_mode<synchronous>, transform_indices = @transform_17, window_bounds = array<i64: 1, 64>}, {pipeline_mode = #tpu.pipeline_mode<synchronous>, transform_indices = @transform_18, window_bounds = array<i64: 1, 64>}, {pipeline_mode = #tpu.pipeline_mode<synchronous>, transform_indices = @transform_19, window_bounds = array<i64: 64, 1024>}, {pipeline_mode = #tpu.pipeline_mode<synchronous>, transform_indices = @transform_20, window_bounds = array<i64: 1, 1024>}, {transform_indices = @transform_21, window_bounds = array<i64: 16, 1024>}]} {
    %c0 = arith.constant 0 : index
    %c0_0 = arith.constant 0 : index
    %0 = vector.load %arg1[%c0, %c0_0] : memref<16x1024xbf16, #tpu.memory_space<vmem>>, vector<16x1024xbf16>
    %c0_1 = arith.constant 0 : index
    %c0_2 = arith.constant 0 : index
    %1 = vector.load %arg2[%c0_1, %c0_2] : memref<1024x64xbf16, #tpu.memory_space<vmem>>, vector<1024x64xbf16>
    %cst = arith.constant dense<0.000000e+00> : vector<16x64xf32>
    %2 = tpu.matmul %0, %1, %cst {dimension_numbers = #tpu.dot_dimension_numbers<[1], [0], [0], [1], [0, 0, 1, 1], [], []>} : vector<16x1024xbf16>, vector<1024x64xbf16>, vector<16x64xf32> -> vector<16x64xf32>
    %c0_3 = arith.constant 0 : index
    %c0_4 = arith.constant 0 : index
    %3 = vector.load %arg3[%c0_3, %c0_4] : memref<1x64xf32, #tpu.memory_space<vmem>>, vector<1x64xf32>
    %4 = vector.broadcast %3 : vector<1x64xf32> to vector<16x64xf32>
    %5 = arith.addf %2, %4 : vector<16x64xf32>
    %cst_5 = arith.constant 0.000000e+00 : f32
    %6 = vector.broadcast %cst_5 : f32 to vector<16x64xf32>
    %7 = arith.maximumf %5, %6 : vector<16x64xf32>
    %cst_6 = arith.constant dense<0.000000e+00> : vector<16xf32>
    %8 = vector.multi_reduction <add>, %7, %cst_6 [1] : vector<16x64xf32> to vector<16xf32>
    %9 = vector.shape_cast %8 : vector<16xf32> to vector<16x1xf32>
    %cst_7 = arith.constant 6.400000e+01 : f32
    %10 = vector.broadcast %cst_7 : f32 to vector<16x1xf32>
    %11 = arith.divf %9, %10 : vector<16x1xf32>
    %12 = arith.mulf %7, %7 : vector<16x64xf32>
    %cst_8 = arith.constant dense<0.000000e+00> : vector<16xf32>
    %13 = vector.multi_reduction <add>, %12, %cst_8 [1] : vector<16x64xf32> to vector<16xf32>
    %14 = vector.shape_cast %13 : vector<16xf32> to vector<16x1xf32>
    %cst_9 = arith.constant 6.400000e+01 : f32
    %15 = vector.broadcast %cst_9 : f32 to vector<16x1xf32>
    %16 = arith.divf %14, %15 : vector<16x1xf32>
    %17 = arith.mulf %11, %11 : vector<16x1xf32>
    %18 = arith.subf %16, %17 : vector<16x1xf32>
    %19 = vector.broadcast %11 : vector<16x1xf32> to vector<16x64xf32>
    %20 = arith.subf %7, %19 : vector<16x64xf32>
    %cst_10 = arith.constant 9.99999974E-6 : f32
    %21 = vector.broadcast %cst_10 : f32 to vector<16x1xf32>
    %22 = arith.addf %18, %21 : vector<16x1xf32>
    %23 = math.rsqrt %22 : vector<16x1xf32>
    %24 = vector.broadcast %23 : vector<16x1xf32> to vector<16x64xf32>
    %25 = arith.mulf %20, %24 : vector<16x64xf32>
    %c0_11 = arith.constant 0 : index
    %c0_12 = arith.constant 0 : index
    %26 = vector.load %arg4[%c0_11, %c0_12] : memref<1x64xf32, #tpu.memory_space<vmem>>, vector<1x64xf32>
    %27 = vector.broadcast %26 : vector<1x64xf32> to vector<16x64xf32>
    %28 = arith.mulf %25, %27 : vector<16x64xf32>
    %c0_13 = arith.constant 0 : index
    %c0_14 = arith.constant 0 : index
    %29 = vector.load %arg5[%c0_13, %c0_14] : memref<1x64xf32, #tpu.memory_space<vmem>>, vector<1x64xf32>
    %30 = vector.broadcast %29 : vector<1x64xf32> to vector<16x64xf32>
    %31 = arith.addf %28, %30 : vector<16x64xf32>
    %32 = arith.truncf %31 : vector<16x64xf32> to vector<16x64xbf16>
    %c0_15 = arith.constant 0 : index
    %c0_16 = arith.constant 0 : index
    %33 = vector.load %arg6[%c0_15, %c0_16] : memref<64x32xbf16, #tpu.memory_space<vmem>>, vector<64x32xbf16>
    %cst_17 = arith.constant dense<0.000000e+00> : vector<16x32xf32>
    %34 = tpu.matmul %32, %33, %cst_17 {dimension_numbers = #tpu.dot_dimension_numbers<[1], [0], [0], [1], [0, 0, 1, 1], [], []>} : vector<16x64xbf16>, vector<64x32xbf16>, vector<16x32xf32> -> vector<16x32xf32>
    %c0_18 = arith.constant 0 : index
    %c0_19 = arith.constant 0 : index
    %35 = vector.load %arg7[%c0_18, %c0_19] : memref<1x32xf32, #tpu.memory_space<vmem>>, vector<1x32xf32>
    %36 = vector.broadcast %35 : vector<1x32xf32> to vector<16x32xf32>
    %37 = arith.addf %34, %36 : vector<16x32xf32>
    %cst_20 = arith.constant 0.000000e+00 : f32
    %38 = vector.broadcast %cst_20 : f32 to vector<16x32xf32>
    %39 = arith.maximumf %37, %38 : vector<16x32xf32>
    %cst_21 = arith.constant dense<0.000000e+00> : vector<16xf32>
    %40 = vector.multi_reduction <add>, %39, %cst_21 [1] : vector<16x32xf32> to vector<16xf32>
    %41 = vector.shape_cast %40 : vector<16xf32> to vector<16x1xf32>
    %cst_22 = arith.constant 3.200000e+01 : f32
    %42 = vector.broadcast %cst_22 : f32 to vector<16x1xf32>
    %43 = arith.divf %41, %42 : vector<16x1xf32>
    %44 = arith.mulf %39, %39 : vector<16x32xf32>
    %cst_23 = arith.constant dense<0.000000e+00> : vector<16xf32>
    %45 = vector.multi_reduction <add>, %44, %cst_23 [1] : vector<16x32xf32> to vector<16xf32>
    %46 = vector.shape_cast %45 : vector<16xf32> to vector<16x1xf32>
    %cst_24 = arith.constant 3.200000e+01 : f32
    %47 = vector.broadcast %cst_24 : f32 to vector<16x1xf32>
    %48 = arith.divf %46, %47 : vector<16x1xf32>
    %49 = arith.mulf %43, %43 : vector<16x1xf32>
    %50 = arith.subf %48, %49 : vector<16x1xf32>
    %51 = vector.broadcast %43 : vector<16x1xf32> to vector<16x32xf32>
    %52 = arith.subf %39, %51 : vector<16x32xf32>
    %cst_25 = arith.constant 9.99999974E-6 : f32
    %53 = vector.broadcast %cst_25 : f32 to vector<16x1xf32>
    %54 = arith.addf %50, %53 : vector<16x1xf32>
    %55 = math.rsqrt %54 : vector<16x1xf32>
    %56 = vector.broadcast %55 : vector<16x1xf32> to vector<16x32xf32>
    %57 = arith.mulf %52, %56 : vector<16x32xf32>
    %c0_26 = arith.constant 0 : index
    %c0_27 = arith.constant 0 : index
    %58 = vector.load %arg8[%c0_26, %c0_27] : memref<1x32xf32, #tpu.memory_space<vmem>>, vector<1x32xf32>
    %59 = vector.broadcast %58 : vector<1x32xf32> to vector<16x32xf32>
    %60 = arith.mulf %57, %59 : vector<16x32xf32>
    %c0_28 = arith.constant 0 : index
    %c0_29 = arith.constant 0 : index
    %61 = vector.load %arg9[%c0_28, %c0_29] : memref<1x32xf32, #tpu.memory_space<vmem>>, vector<1x32xf32>
    %62 = vector.broadcast %61 : vector<1x32xf32> to vector<16x32xf32>
    %63 = arith.addf %60, %62 : vector<16x32xf32>
    %64 = arith.truncf %63 : vector<16x32xf32> to vector<16x32xbf16>
    %c0_30 = arith.constant 0 : index
    %c0_31 = arith.constant 0 : index
    %65 = vector.load %arg10[%c0_30, %c0_31] : memref<32x2xbf16, #tpu.memory_space<vmem>>, vector<32x2xbf16>
    %cst_32 = arith.constant dense<0.000000e+00> : vector<16x2xf32>
    %66 = tpu.matmul %64, %65, %cst_32 {dimension_numbers = #tpu.dot_dimension_numbers<[1], [0], [0], [1], [0, 0, 1, 1], [], []>} : vector<16x32xbf16>, vector<32x2xbf16>, vector<16x2xf32> -> vector<16x2xf32>
    %c0_33 = arith.constant 0 : index
    %c0_34 = arith.constant 0 : index
    %67 = vector.load %arg11[%c0_33, %c0_34] : memref<1x2xf32, #tpu.memory_space<vmem>>, vector<1x2xf32>
    %68 = vector.broadcast %67 : vector<1x2xf32> to vector<16x2xf32>
    %69 = arith.addf %66, %68 : vector<16x2xf32>
    %70 = arith.truncf %69 : vector<16x2xf32> to vector<16x2xbf16>
    %c0_35 = arith.constant 0 : index
    %c0_36 = arith.constant 0 : index
    %71 = vector.load %arg12[%c0_35, %c0_36] : memref<2x32xbf16, #tpu.memory_space<vmem>>, vector<2x32xbf16>
    %cst_37 = arith.constant dense<0.000000e+00> : vector<16x32xf32>
    %72 = tpu.matmul %70, %71, %cst_37 {dimension_numbers = #tpu.dot_dimension_numbers<[1], [0], [0], [1], [0, 0, 1, 1], [], []>} : vector<16x2xbf16>, vector<2x32xbf16>, vector<16x32xf32> -> vector<16x32xf32>
    %c0_38 = arith.constant 0 : index
    %c0_39 = arith.constant 0 : index
    %73 = vector.load %arg13[%c0_38, %c0_39] : memref<1x32xf32, #tpu.memory_space<vmem>>, vector<1x32xf32>
    %74 = vector.broadcast %73 : vector<1x32xf32> to vector<16x32xf32>
    %75 = arith.addf %72, %74 : vector<16x32xf32>
    %cst_40 = arith.constant 0.000000e+00 : f32
    %76 = vector.broadcast %cst_40 : f32 to vector<16x32xf32>
    %77 = arith.maximumf %75, %76 : vector<16x32xf32>
    %cst_41 = arith.constant dense<0.000000e+00> : vector<16xf32>
    %78 = vector.multi_reduction <add>, %77, %cst_41 [1] : vector<16x32xf32> to vector<16xf32>
    %79 = vector.shape_cast %78 : vector<16xf32> to vector<16x1xf32>
    %cst_42 = arith.constant 3.200000e+01 : f32
    %80 = vector.broadcast %cst_42 : f32 to vector<16x1xf32>
    %81 = arith.divf %79, %80 : vector<16x1xf32>
    %82 = arith.mulf %77, %77 : vector<16x32xf32>
    %cst_43 = arith.constant dense<0.000000e+00> : vector<16xf32>
    %83 = vector.multi_reduction <add>, %82, %cst_43 [1] : vector<16x32xf32> to vector<16xf32>
    %84 = vector.shape_cast %83 : vector<16xf32> to vector<16x1xf32>
    %cst_44 = arith.constant 3.200000e+01 : f32
    %85 = vector.broadcast %cst_44 : f32 to vector<16x1xf32>
    %86 = arith.divf %84, %85 : vector<16x1xf32>
    %87 = arith.mulf %81, %81 : vector<16x1xf32>
    %88 = arith.subf %86, %87 : vector<16x1xf32>
    %89 = vector.broadcast %81 : vector<16x1xf32> to vector<16x32xf32>
    %90 = arith.subf %77, %89 : vector<16x32xf32>
    %cst_45 = arith.constant 9.99999974E-6 : f32
    %91 = vector.broadcast %cst_45 : f32 to vector<16x1xf32>
    %92 = arith.addf %88, %91 : vector<16x1xf32>
    %93 = math.rsqrt %92 : vector<16x1xf32>
    %94 = vector.broadcast %93 : vector<16x1xf32> to vector<16x32xf32>
    %95 = arith.mulf %90, %94 : vector<16x32xf32>
    %c0_46 = arith.constant 0 : index
    %c0_47 = arith.constant 0 : index
    %96 = vector.load %arg14[%c0_46, %c0_47] : memref<1x32xf32, #tpu.memory_space<vmem>>, vector<1x32xf32>
    %97 = vector.broadcast %96 : vector<1x32xf32> to vector<16x32xf32>
    %98 = arith.mulf %95, %97 : vector<16x32xf32>
    %c0_48 = arith.constant 0 : index
    %c0_49 = arith.constant 0 : index
    %99 = vector.load %arg15[%c0_48, %c0_49] : memref<1x32xf32, #tpu.memory_space<vmem>>, vector<1x32xf32>
    %100 = vector.broadcast %99 : vector<1x32xf32> to vector<16x32xf32>
    %101 = arith.addf %98, %100 : vector<16x32xf32>
    %102 = arith.truncf %101 : vector<16x32xf32> to vector<16x32xbf16>
    %c0_50 = arith.constant 0 : index
    %c0_51 = arith.constant 0 : index
    %103 = vector.load %arg16[%c0_50, %c0_51] : memref<32x64xbf16, #tpu.memory_space<vmem>>, vector<32x64xbf16>
    %cst_52 = arith.constant dense<0.000000e+00> : vector<16x64xf32>
    %104 = tpu.matmul %102, %103, %cst_52 {dimension_numbers = #tpu.dot_dimension_numbers<[1], [0], [0], [1], [0, 0, 1, 1], [], []>} : vector<16x32xbf16>, vector<32x64xbf16>, vector<16x64xf32> -> vector<16x64xf32>
    %c0_53 = arith.constant 0 : index
    %c0_54 = arith.constant 0 : index
    %105 = vector.load %arg17[%c0_53, %c0_54] : memref<1x64xf32, #tpu.memory_space<vmem>>, vector<1x64xf32>
    %106 = vector.broadcast %105 : vector<1x64xf32> to vector<16x64xf32>
    %107 = arith.addf %104, %106 : vector<16x64xf32>
    %cst_55 = arith.constant 0.000000e+00 : f32
    %108 = vector.broadcast %cst_55 : f32 to vector<16x64xf32>
    %109 = arith.maximumf %107, %108 : vector<16x64xf32>
    %cst_56 = arith.constant dense<0.000000e+00> : vector<16xf32>
    %110 = vector.multi_reduction <add>, %109, %cst_56 [1] : vector<16x64xf32> to vector<16xf32>
    %111 = vector.shape_cast %110 : vector<16xf32> to vector<16x1xf32>
    %cst_57 = arith.constant 6.400000e+01 : f32
    %112 = vector.broadcast %cst_57 : f32 to vector<16x1xf32>
    %113 = arith.divf %111, %112 : vector<16x1xf32>
    %114 = arith.mulf %109, %109 : vector<16x64xf32>
    %cst_58 = arith.constant dense<0.000000e+00> : vector<16xf32>
    %115 = vector.multi_reduction <add>, %114, %cst_58 [1] : vector<16x64xf32> to vector<16xf32>
    %116 = vector.shape_cast %115 : vector<16xf32> to vector<16x1xf32>
    %cst_59 = arith.constant 6.400000e+01 : f32
    %117 = vector.broadcast %cst_59 : f32 to vector<16x1xf32>
    %118 = arith.divf %116, %117 : vector<16x1xf32>
    %119 = arith.mulf %113, %113 : vector<16x1xf32>
    %120 = arith.subf %118, %119 : vector<16x1xf32>
    %121 = vector.broadcast %113 : vector<16x1xf32> to vector<16x64xf32>
    %122 = arith.subf %109, %121 : vector<16x64xf32>
    %cst_60 = arith.constant 9.99999974E-6 : f32
    %123 = vector.broadcast %cst_60 : f32 to vector<16x1xf32>
    %124 = arith.addf %120, %123 : vector<16x1xf32>
    %125 = math.rsqrt %124 : vector<16x1xf32>
    %126 = vector.broadcast %125 : vector<16x1xf32> to vector<16x64xf32>
    %127 = arith.mulf %122, %126 : vector<16x64xf32>
    %c0_61 = arith.constant 0 : index
    %c0_62 = arith.constant 0 : index
    %128 = vector.load %arg18[%c0_61, %c0_62] : memref<1x64xf32, #tpu.memory_space<vmem>>, vector<1x64xf32>
    %129 = vector.broadcast %128 : vector<1x64xf32> to vector<16x64xf32>
    %130 = arith.mulf %127, %129 : vector<16x64xf32>
    %c0_63 = arith.constant 0 : index
    %c0_64 = arith.constant 0 : index
    %131 = vector.load %arg19[%c0_63, %c0_64] : memref<1x64xf32, #tpu.memory_space<vmem>>, vector<1x64xf32>
    %132 = vector.broadcast %131 : vector<1x64xf32> to vector<16x64xf32>
    %133 = arith.addf %130, %132 : vector<16x64xf32>
    %134 = arith.truncf %133 : vector<16x64xf32> to vector<16x64xbf16>
    %c0_65 = arith.constant 0 : index
    %c0_66 = arith.constant 0 : index
    %135 = vector.load %arg20[%c0_65, %c0_66] : memref<64x1024xbf16, #tpu.memory_space<vmem>>, vector<64x1024xbf16>
    %cst_67 = arith.constant dense<0.000000e+00> : vector<16x1024xf32>
    %136 = tpu.matmul %134, %135, %cst_67 {dimension_numbers = #tpu.dot_dimension_numbers<[1], [0], [0], [1], [0, 0, 1, 1], [], []>} : vector<16x64xbf16>, vector<64x1024xbf16>, vector<16x1024xf32> -> vector<16x1024xf32>
    %c0_68 = arith.constant 0 : index
    %c0_69 = arith.constant 0 : index
    %137 = vector.load %arg21[%c0_68, %c0_69] : memref<1x1024xf32, #tpu.memory_space<vmem>>, vector<1x1024xf32>
    %138 = vector.broadcast %137 : vector<1x1024xf32> to vector<16x1024xf32>
    %139 = arith.addf %136, %138 : vector<16x1024xf32>
    %cst_70 = arith.constant 0.000000e+00 : f32
    %140 = vector.broadcast %cst_70 : f32 to vector<16x1024xf32>
    %141 = arith.subf %140, %139 : vector<16x1024xf32>
    %142 = math.exp %141 : vector<16x1024xf32>
    %cst_71 = arith.constant 1.000000e+00 : f32
    %143 = vector.broadcast %cst_71 : f32 to vector<16x1024xf32>
    %144 = arith.addf %143, %142 : vector<16x1024xf32>
    %145 = tpu.reciprocal %144 {approx = true} : vector<16x1024xf32> -> vector<16x1024xf32>
    %cst_72 = arith.constant 1.000000e+00 : f32
    %146 = vector.broadcast %cst_72 : f32 to vector<16x1024xf32>
    %147 = arith.minimumf %145, %146 : vector<16x1024xf32>
    %c0_73 = arith.constant 0 : index
    %c0_74 = arith.constant 0 : index
    %148 = vector.load %arg22[%c0_73, %c0_74] : memref<16x1024xf32, #tpu.memory_space<vmem>>, vector<16x1024xf32>
    tpu.vector_store %arg22[%c0_73, %c0_74], %147 {strides = array<i32>} : memref<16x1024xf32, #tpu.memory_space<vmem>>, vector<16x1024xf32>,
    return
  }
  func.func @transform_0(%arg0: i32) -> (i32, i32) {
    %c0_i32 = arith.constant 0 : i32
    %c0_i32_0 = arith.constant 0 : i32
    return %arg0, %c0_i32 : i32, i32
  }
  func.func @transform_1(%arg0: i32) -> (i32, i32) {
    %c0_i32 = arith.constant 0 : i32
    %c0_i32_0 = arith.constant 0 : i32
    %c0_i32_1 = arith.constant 0 : i32
    return %c0_i32, %c0_i32_0 : i32, i32
  }
  func.func @transform_2(%arg0: i32) -> (i32, i32) {
    %c0_i32 = arith.constant 0 : i32
    %c0_i32_0 = arith.constant 0 : i32
    %c0_i32_1 = arith.constant 0 : i32
    return %c0_i32, %c0_i32_0 : i32, i32
  }
  func.func @transform_3(%arg0: i32) -> (i32, i32) {
    %c0_i32 = arith.constant 0 : i32
    %c0_i32_0 = arith.constant 0 : i32
    %c0_i32_1 = arith.constant 0 : i32
    return %c0_i32, %c0_i32_0 : i32, i32
  }
  func.func @transform_4(%arg0: i32) -> (i32, i32) {
    %c0_i32 = arith.constant 0 : i32
    %c0_i32_0 = arith.constant 0 : i32
    %c0_i32_1 = arith.constant 0 : i32
    return %c0_i32, %c0_i32_0 : i32, i32
  }
  func.func @transform_5(%arg0: i32) -> (i32, i32) {
    %c0_i32 = arith.constant 0 : i32
    %c0_i32_0 = arith.constant 0 : i32
    %c0_i32_1 = arith.constant 0 : i32
    return %c0_i32, %c0_i32_0 : i32, i32
  }
  func.func @transform_6(%arg0: i32) -> (i32, i32) {
    %c0_i32 = arith.constant 0 : i32
    %c0_i32_0 = arith.constant 0 : i32
    %c0_i32_1 = arith.constant 0 : i32
    return %c0_i32, %c0_i32_0 : i32, i32
  }
  func.func @transform_7(%arg0: i32) -> (i32, i32) {
    %c0_i32 = arith.constant 0 : i32
    %c0_i32_0 = arith.constant 0 : i32
    %c0_i32_1 = arith.constant 0 : i32
    return %c0_i32, %c0_i32_0 : i32, i32
  }
  func.func @transform_8(%arg0: i32) -> (i32, i32) {
    %c0_i32 = arith.constant 0 : i32
    %c0_i32_0 = arith.constant 0 : i32
    %c0_i32_1 = arith.constant 0 : i32
    return %c0_i32, %c0_i32_0 : i32, i32
  }
  func.func @transform_9(%arg0: i32) -> (i32, i32) {
    %c0_i32 = arith.constant 0 : i32
    %c0_i32_0 = arith.constant 0 : i32
    %c0_i32_1 = arith.constant 0 : i32
    return %c0_i32, %c0_i32_0 : i32, i32
  }
  func.func @transform_10(%arg0: i32) -> (i32, i32) {
    %c0_i32 = arith.constant 0 : i32
    %c0_i32_0 = arith.constant 0 : i32
    %c0_i32_1 = arith.constant 0 : i32
    return %c0_i32, %c0_i32_0 : i32, i32
  }
  func.func @transform_11(%arg0: i32) -> (i32, i32) {
    %c0_i32 = arith.constant 0 : i32
    %c0_i32_0 = arith.constant 0 : i32
    %c0_i32_1 = arith.constant 0 : i32
    return %c0_i32, %c0_i32_0 : i32, i32
  }
  func.func @transform_12(%arg0: i32) -> (i32, i32) {
    %c0_i32 = arith.constant 0 : i32
    %c0_i32_0 = arith.constant 0 : i32
    %c0_i32_1 = arith.constant 0 : i32
    return %c0_i32, %c0_i32_0 : i32, i32
  }
  func.func @transform_13(%arg0: i32) -> (i32, i32) {
    %c0_i32 = arith.constant 0 : i32
    %c0_i32_0 = arith.constant 0 : i32
    %c0_i32_1 = arith.constant 0 : i32
    return %c0_i32, %c0_i32_0 : i32, i32
  }
  func.func @transform_14(%arg0: i32) -> (i32, i32) {
    %c0_i32 = arith.constant 0 : i32
    %c0_i32_0 = arith.constant 0 : i32
    %c0_i32_1 = arith.constant 0 : i32
    return %c0_i32, %c0_i32_0 : i32, i32
  }
  func.func @transform_15(%arg0: i32) -> (i32, i32) {
    %c0_i32 = arith.constant 0 : i32
    %c0_i32_0 = arith.constant 0 : i32
    %c0_i32_1 = arith.constant 0 : i32
    return %c0_i32, %c0_i32_0 : i32, i32
  }
  func.func @transform_16(%arg0: i32) -> (i32, i32) {
    %c0_i32 = arith.constant 0 : i32
    %c0_i32_0 = arith.constant 0 : i32
    %c0_i32_1 = arith.constant 0 : i32
    return %c0_i32, %c0_i32_0 : i32, i32
  }
  func.func @transform_17(%arg0: i32) -> (i32, i32) {
    %c0_i32 = arith.constant 0 : i32
    %c0_i32_0 = arith.constant 0 : i32
    %c0_i32_1 = arith.constant 0 : i32
    return %c0_i32, %c0_i32_0 : i32, i32
  }
  func.func @transform_18(%arg0: i32) -> (i32, i32) {
    %c0_i32 = arith.constant 0 : i32
    %c0_i32_0 = arith.constant 0 : i32
    %c0_i32_1 = arith.constant 0 : i32
    return %c0_i32, %c0_i32_0 : i32, i32
  }
  func.func @transform_19(%arg0: i32) -> (i32, i32) {
    %c0_i32 = arith.constant 0 : i32
    %c0_i32_0 = arith.constant 0 : i32
    %c0_i32_1 = arith.constant 0 : i32
    return %c0_i32, %c0_i32_0 : i32, i32
  }
  func.func @transform_20(%arg0: i32) -> (i32, i32) {
    %c0_i32 = arith.constant 0 : i32
    %c0_i32_0 = arith.constant 0 : i32
    %c0_i32_1 = arith.constant 0 : i32
    return %c0_i32, %c0_i32_0 : i32, i32
  }
  func.func @transform_21(%arg0: i32) -> (i32, i32) {
    %c0_i32 = arith.constant 0 : i32
    %c0_i32_0 = arith.constant 0 : i32
    return %arg0, %c0_i32 : i32, i32
  }
}

</mosaic_0001>

<llo_original>
// kernel: dense_autoencoder_forward.1
$region0: #{dense_autoencoder_forward.1}
  #allocation0 [shape = 'u32[]', space=smem, size = 0x4, offset = 0x4, fixed_abs, tag = 'smem constant byte address 0x4 - core index']
  #allocation1 [shape = 'u32[144,128]{1,0:T(1,128)}', space=vmem, size = 0x12000, scoped, tag = 'internal scratch']
  %s0 = inlined_call_operand.vmem [shape: bf16[16,1024], index: 0, kind: input, shape index: {}]
  %s1 = inlined_call_operand.vmem [shape: bf16[1024,64], index: 1, kind: input, shape index: {}]
  %s2 = inlined_call_operand.vmem [shape: f32[1,64], index: 2, kind: input, shape index: {}]
  %s3 = inlined_call_operand.vmem [shape: f32[1,64], index: 3, kind: input, shape index: {}, may-alias: {3,17}]
  %s4 = inlined_call_operand.vmem [shape: f32[1,64], index: 4, kind: input, shape index: {}, may-alias: {4,18}]
  %s5 = inlined_call_operand.vmem [shape: bf16[64,32], index: 5, kind: input, shape index: {}]
  %s6 = inlined_call_operand.vmem [shape: f32[1,32], index: 6, kind: input, shape index: {}]
  %s7 = inlined_call_operand.vmem [shape: f32[1,32], index: 7, kind: input, shape index: {}, may-alias: {7,13}]
  %s8 = inlined_call_operand.vmem [shape: f32[1,32], index: 8, kind: input, shape index: {}, may-alias: {8,14}]
  %s9 = inlined_call_operand.vmem [shape: bf16[32,2], index: 9, kind: input, shape index: {}]
  %s10 = inlined_call_operand.vmem [shape: f32[1,2], index: 10, kind: input, shape index: {}]
  %s11 = inlined_call_operand.vmem [shape: bf16[2,32], index: 11, kind: input, shape index: {}]
  %s12 = inlined_call_operand.vmem [shape: f32[1,32], index: 12, kind: input, shape index: {}]
  %s13 = inlined_call_operand.vmem [shape: f32[1,32], index: 13, kind: input, shape index: {}, may-alias: {7,13}]
  %s14 = inlined_call_operand.vmem [shape: f32[1,32], index: 14, kind: input, shape index: {}, may-alias: {8,14}]
  %s15 = inlined_call_operand.vmem [shape: bf16[32,64], index: 15, kind: input, shape index: {}]
  %s16 = inlined_call_operand.vmem [shape: f32[1,64], index: 16, kind: input, shape index: {}]
  %s17 = inlined_call_operand.vmem [shape: f32[1,64], index: 17, kind: input, shape index: {}, may-alias: {3,17}]
  %s18 = inlined_call_operand.vmem [shape: f32[1,64], index: 18, kind: input, shape index: {}, may-alias: {4,18}]
  %s19 = inlined_call_operand.vmem [shape: bf16[64,1024], index: 19, kind: input, shape index: {}]
  %s20 = inlined_call_operand.vmem [shape: f32[1,1024], index: 20, kind: input, shape index: {}]
  %s21 = inlined_call_operand.vmem [shape: f32[16,1024], index: 21, kind: output, shape index: {}]
  %s22 = sld [smem:[#allocation0]]
  $region94: #{dense_autoencoder_forward.1} parent=0
    _
  %s24 = ssub.s32 1, %s22
  %s25 = scalar_select 0, %s24, %s22
  // Predicated region
  $region2: #{dense_autoencoder_forward.1} parent=0 // pred_check
    _
  $region3: #{dense_autoencoder_forward.1} parent=0 // pred_check_branch
    %27 = sbr.rel (0) target = $region5
  $region4: #{dense_autoencoder_forward.1} parent=0 // pred_region
    _
  $region5: #{dense_autoencoder_forward.1} parent=0 // pred_fallthru
    _
  // Predicated region
  $region6: #{dense_autoencoder_forward.1} parent=0 // pred_check
    _
  $region7: #{dense_autoencoder_forward.1} parent=0 // pred_check_branch
    %29 = sbr.rel (0) target = $region9
  $region8: #{dense_autoencoder_forward.1} parent=0 // pred_region
    _
  $region9: #{dense_autoencoder_forward.1} parent=0 // pred_fallthru
    _
  // Predicated region
  $region10: #{dense_autoencoder_forward.1} parent=0 // pred_check
    _
  $region11: #{dense_autoencoder_forward.1} parent=0 // pred_check_branch
    %31 = sbr.rel (0) target = $region13
  $region12: #{dense_autoencoder_forward.1} parent=0 // pred_region
    _
  $region13: #{dense_autoencoder_forward.1} parent=0 // pred_fallthru
    _
  // Predicated region
  $region14: #{dense_autoencoder_forward.1} parent=0 // pred_check
    _
  $region15: #{dense_autoencoder_forward.1} parent=0 // pred_check_branch
    %33 = sbr.rel (0) target = $region17
  $region16: #{dense_autoencoder_forward.1} parent=0 // pred_region
    _
  $region17: #{dense_autoencoder_forward.1} parent=0 // pred_fallthru
    _
  // Predicated region
  $region18: #{dense_autoencoder_forward.1} parent=0 // pred_check
    _
  $region19: #{dense_autoencoder_forward.1} parent=0 // pred_check_branch
    %35 = sbr.rel (0) target = $region21
  $region20: #{dense_autoencoder_forward.1} parent=0 // pred_region
    _
  $region21: #{dense_autoencoder_forward.1} parent=0 // pred_fallthru
    _
  // Predicated region
  $region22: #{dense_autoencoder_forward.1} parent=0 // pred_check
    _
  $region23: #{dense_autoencoder_forward.1} parent=0 // pred_check_branch
    %37 = sbr.rel (0) target = $region25
  $region24: #{dense_autoencoder_forward.1} parent=0 // pred_region
    _
  $region25: #{dense_autoencoder_forward.1} parent=0 // pred_fallthru
    _
  // Predicated region
  $region26: #{dense_autoencoder_forward.1} parent=0 // pred_check
    _
  $region27: #{dense_autoencoder_forward.1} parent=0 // pred_check_branch
    %39 = sbr.rel (0) target = $region29
  $region28: #{dense_autoencoder_forward.1} parent=0 // pred_region
    _
  $region29: #{dense_autoencoder_forward.1} parent=0 // pred_fallthru
    _
  // Predicated region
  $region30: #{dense_autoencoder_forward.1} parent=0 // pred_check
    _
  $region31: #{dense_autoencoder_forward.1} parent=0 // pred_check_branch
    %41 = sbr.rel (0) target = $region33
  $region32: #{dense_autoencoder_forward.1} parent=0 // pred_region
    _
  $region33: #{dense_autoencoder_forward.1} parent=0 // pred_fallthru
    _
  // Predicated region
  $region34: #{dense_autoencoder_forward.1} parent=0 // pred_check
    _
  $region35: #{dense_autoencoder_forward.1} parent=0 // pred_check_branch
    %43 = sbr.rel (0) target = $region37
  $region36: #{dense_autoencoder_forward.1} parent=0 // pred_region
    _
  $region37: #{dense_autoencoder_forward.1} parent=0 // pred_fallthru
    _
  // Predicated region
  $region38: #{dense_autoencoder_forward.1} parent=0 // pred_check
    _
  $region39: #{dense_autoencoder_forward.1} parent=0 // pred_check_branch
    %45 = sbr.rel (0) target = $region41
  $region40: #{dense_autoencoder_forward.1} parent=0 // pred_region
    _
  $region41: #{dense_autoencoder_forward.1} parent=0 // pred_fallthru
    _
  // Predicated region
  $region42: #{dense_autoencoder_forward.1} parent=0 // pred_check
    _
  $region43: #{dense_autoencoder_forward.1} parent=0 // pred_check_branch
    %47 = sbr.rel (0) target = $region45
  $region44: #{dense_autoencoder_forward.1} parent=0 // pred_region
    _
  $region45: #{dense_autoencoder_forward.1} parent=0 // pred_fallthru
    _
  // Predicated region
  $region46: #{dense_autoencoder_forward.1} parent=0 // pred_check
    _
  $region47: #{dense_autoencoder_forward.1} parent=0 // pred_check_branch
    %49 = sbr.rel (0) target = $region49
  $region48: #{dense_autoencoder_forward.1} parent=0 // pred_region
    _
  $region49: #{dense_autoencoder_forward.1} parent=0 // pred_fallthru
    _
  // Predicated region
  $region50: #{dense_autoencoder_forward.1} parent=0 // pred_check
    _
  $region51: #{dense_autoencoder_forward.1} parent=0 // pred_check_branch
    %51 = sbr.rel (0) target = $region53
  $region52: #{dense_autoencoder_forward.1} parent=0 // pred_region
    _
  $region53: #{dense_autoencoder_forward.1} parent=0 // pred_fallthru
    _
  // Predicated region
  $region54: #{dense_autoencoder_forward.1} parent=0 // pred_check
    _
  $region55: #{dense_autoencoder_forward.1} parent=0 // pred_check_branch
    %53 = sbr.rel (0) target = $region57
  $region56: #{dense_autoencoder_forward.1} parent=0 // pred_region
    _
  $region57: #{dense_autoencoder_forward.1} parent=0 // pred_fallthru
    _
  // Predicated region
  $region58: #{dense_autoencoder_forward.1} parent=0 // pred_check
    _
  $region59: #{dense_autoencoder_forward.1} parent=0 // pred_check_branch
    %55 = sbr.rel (0) target = $region61
  $region60: #{dense_autoencoder_forward.1} parent=0 // pred_region
    _
  $region61: #{dense_autoencoder_forward.1} parent=0 // pred_fallthru
    _
  // Predicated region
  $region62: #{dense_autoencoder_forward.1} parent=0 // pred_check
    _
  $region63: #{dense_autoencoder_forward.1} parent=0 // pred_check_branch
    %57 = sbr.rel (0) target = $region65
  $region64: #{dense_autoencoder_forward.1} parent=0 // pred_region
    _
  $region65: #{dense_autoencoder_forward.1} parent=0 // pred_fallthru
    _
  // Predicated region
  $region66: #{dense_autoencoder_forward.1} parent=0 // pred_check
    _
  $region67: #{dense_autoencoder_forward.1} parent=0 // pred_check_branch
    %59 = sbr.rel (0) target = $region69
  $region68: #{dense_autoencoder_forward.1} parent=0 // pred_region
    _
  $region69: #{dense_autoencoder_forward.1} parent=0 // pred_fallthru
    _
  // Predicated region
  $region70: #{dense_autoencoder_forward.1} parent=0 // pred_check
    _
  $region71: #{dense_autoencoder_forward.1} parent=0 // pred_check_branch
    %61 = sbr.rel (0) target = $region73
  $region72: #{dense_autoencoder_forward.1} parent=0 // pred_region
    _
  $region73: #{dense_autoencoder_forward.1} parent=0 // pred_fallthru
    _
  // Predicated region
  $region74: #{dense_autoencoder_forward.1} parent=0 // pred_check
    _
  $region75: #{dense_autoencoder_forward.1} parent=0 // pred_check_branch
    %63 = sbr.rel (0) target = $region77
  $region76: #{dense_autoencoder_forward.1} parent=0 // pred_region
    _
  $region77: #{dense_autoencoder_forward.1} parent=0 // pred_fallthru
    _
  // Predicated region
  $region78: #{dense_autoencoder_forward.1} parent=0 // pred_check
    _
  $region79: #{dense_autoencoder_forward.1} parent=0 // pred_check_branch
    %65 = sbr.rel (0) target = $region81
  $region80: #{dense_autoencoder_forward.1} parent=0 // pred_region
    _
  $region81: #{dense_autoencoder_forward.1} parent=0 // pred_fallthru
    _
  // Predicated region
  $region82: #{dense_autoencoder_forward.1} parent=0 // pred_check
    _
  $region83: #{dense_autoencoder_forward.1} parent=0 // pred_check_branch
    %67 = sbr.rel (0) target = $region85
  $region84: #{dense_autoencoder_forward.1} parent=0 // pred_region
    _
  $region85: #{dense_autoencoder_forward.1} parent=0 // pred_fallthru
    _
  %v69 = vld [vmem:[%s0] sm:$0xff]
  %v70 = vld [vmem:[%s0 + $0x8] sm:$0xff]
  %v71 = vld [vmem:[%s0 + $0x10] sm:$0xff]
  %v72 = vld [vmem:[%s0 + $0x18] sm:$0xff]
  %v73 = vld [vmem:[%s0 + $0x20] sm:$0xff]
  %v74 = vld [vmem:[%s0 + $0x28] sm:$0xff]
  %v75 = vld [vmem:[%s0 + $0x30] sm:$0xff]
  %v76 = vld [vmem:[%s0 + $0x38] sm:$0xff]
  %v77 = vld [vmem:[%s1] sm:$0xf]
  %v78 = vld [vmem:[%s1 + $0x4] sm:$0xf]
  %v79 = vld [vmem:[%s1 + $0x8] sm:$0xf]
  %v80 = vld [vmem:[%s1 + $0xc] sm:$0xf]
  %v81 = vld [vmem:[%s1 + $0x10] sm:$0xf]
  %v82 = vld [vmem:[%s1 + $0x14] sm:$0xf]
  %v83 = vld [vmem:[%s1 + $0x18] sm:$0xf]
  %v84 = vld [vmem:[%s1 + $0x1c] sm:$0xf]
  %v85 = vld [vmem:[%s1 + $0x20] sm:$0xf]
  %v86 = vld [vmem:[%s1 + $0x24] sm:$0xf]
  %v87 = vld [vmem:[%s1 + $0x28] sm:$0xf]
  %v88 = vld [vmem:[%s1 + $0x2c] sm:$0xf]
  %v89 = vld [vmem:[%s1 + $0x30] sm:$0xf]
  %v90 = vld [vmem:[%s1 + $0x34] sm:$0xf]
  %v91 = vld [vmem:[%s1 + $0x38] sm:$0xf]
  %v92 = vld [vmem:[%s1 + $0x3c] sm:$0xf]
  %v93 = vld [vmem:[%s1 + $0x40] sm:$0xf]
  %v94 = vld [vmem:[%s1 + $0x44] sm:$0xf]
  %v95 = vld [vmem:[%s1 + $0x48] sm:$0xf]
  %v96 = vld [vmem:[%s1 + $0x4c] sm:$0xf]
  %v97 = vld [vmem:[%s1 + $0x50] sm:$0xf]
  %v98 = vld [vmem:[%s1 + $0x54] sm:$0xf]
  %v99 = vld [vmem:[%s1 + $0x58] sm:$0xf]
  %v100 = vld [vmem:[%s1 + $0x5c] sm:$0xf]
  %v101 = vld [vmem:[%s1 + $0x60] sm:$0xf]
  %v102 = vld [vmem:[%s1 + $0x64] sm:$0xf]
  %v103 = vld [vmem:[%s1 + $0x68] sm:$0xf]
  %v104 = vld [vmem:[%s1 + $0x6c] sm:$0xf]
  %v105 = vld [vmem:[%s1 + $0x70] sm:$0xf]
  %v106 = vld [vmem:[%s1 + $0x74] sm:$0xf]
  %v107 = vld [vmem:[%s1 + $0x78] sm:$0xf]
  %v108 = vld [vmem:[%s1 + $0x7c] sm:$0xf]
  %v109 = vld [vmem:[%s1 + $0x80] sm:$0xf]
  %v110 = vld [vmem:[%s1 + $0x84] sm:$0xf]
  %v111 = vld [vmem:[%s1 + $0x88] sm:$0xf]
  %v112 = vld [vmem:[%s1 + $0x8c] sm:$0xf]
  %v113 = vld [vmem:[%s1 + $0x90] sm:$0xf]
  %v114 = vld [vmem:[%s1 + $0x94] sm:$0xf]
  %v115 = vld [vmem:[%s1 + $0x98] sm:$0xf]
  %v116 = vld [vmem:[%s1 + $0x9c] sm:$0xf]
  %v117 = vld [vmem:[%s1 + $0xa0] sm:$0xf]
  %v118 = vld [vmem:[%s1 + $0xa4] sm:$0xf]
  %v119 = vld [vmem:[%s1 + $0xa8] sm:$0xf]
  %v120 = vld [vmem:[%s1 + $0xac] sm:$0xf]
  %v121 = vld [vmem:[%s1 + $0xb0] sm:$0xf]
  %v122 = vld [vmem:[%s1 + $0xb4] sm:$0xf]
  %v123 = vld [vmem:[%s1 + $0xb8] sm:$0xf]
  %v124 = vld [vmem:[%s1 + $0xbc] sm:$0xf]
  %v125 = vld [vmem:[%s1 + $0xc0] sm:$0xf]
  %v126 = vld [vmem:[%s1 + $0xc4] sm:$0xf]
  %v127 = vld [vmem:[%s1 + $0xc8] sm:$0xf]
  %v128 = vld [vmem:[%s1 + $0xcc] sm:$0xf]
  %v129 = vld [vmem:[%s1 + $0xd0] sm:$0xf]
  %v130 = vld [vmem:[%s1 + $0xd4] sm:$0xf]
  %v131 = vld [vmem:[%s1 + $0xd8] sm:$0xf]
  %v132 = vld [vmem:[%s1 + $0xdc] sm:$0xf]
  %v133 = vld [vmem:[%s1 + $0xe0] sm:$0xf]
  %v134 = vld [vmem:[%s1 + $0xe4] sm:$0xf]
  %v135 = vld [vmem:[%s1 + $0xe8] sm:$0xf]
  %v136 = vld [vmem:[%s1 + $0xec] sm:$0xf]
  %v137 = vld [vmem:[%s1 + $0xf0] sm:$0xf]
  %v138 = vld [vmem:[%s1 + $0xf4] sm:$0xf]
  %v139 = vld [vmem:[%s1 + $0xf8] sm:$0xf]
  %v140 = vld [vmem:[%s1 + $0xfc] sm:$0xf]
  %v141 = vld [vmem:[%s1 + $0x100] sm:$0xf]
  %v142 = vld [vmem:[%s1 + $0x104] sm:$0xf]
  %v143 = vld [vmem:[%s1 + $0x108] sm:$0xf]
  %v144 = vld [vmem:[%s1 + $0x10c] sm:$0xf]
  %v145 = vld [vmem:[%s1 + $0x110] sm:$0xf]
  %v146 = vld [vmem:[%s1 + $0x114] sm:$0xf]
  %v147 = vld [vmem:[%s1 + $0x118] sm:$0xf]
  %v148 = vld [vmem:[%s1 + $0x11c] sm:$0xf]
  %v149 = vld [vmem:[%s1 + $0x120] sm:$0xf]
  %v150 = vld [vmem:[%s1 + $0x124] sm:$0xf]
  %v151 = vld [vmem:[%s1 + $0x128] sm:$0xf]
  %v152 = vld [vmem:[%s1 + $0x12c] sm:$0xf]
  %v153 = vld [vmem:[%s1 + $0x130] sm:$0xf]
  %v154 = vld [vmem:[%s1 + $0x134] sm:$0xf]
  %v155 = vld [vmem:[%s1 + $0x138] sm:$0xf]
  %v156 = vld [vmem:[%s1 + $0x13c] sm:$0xf]
  %v157 = vld [vmem:[%s1 + $0x140] sm:$0xf]
  %v158 = vld [vmem:[%s1 + $0x144] sm:$0xf]
  %v159 = vld [vmem:[%s1 + $0x148] sm:$0xf]
  %v160 = vld [vmem:[%s1 + $0x14c] sm:$0xf]
  %v161 = vld [vmem:[%s1 + $0x150] sm:$0xf]
  %v162 = vld [vmem:[%s1 + $0x154] sm:$0xf]
  %v163 = vld [vmem:[%s1 + $0x158] sm:$0xf]
  %v164 = vld [vmem:[%s1 + $0x15c] sm:$0xf]
  %v165 = vld [vmem:[%s1 + $0x160] sm:$0xf]
  %v166 = vld [vmem:[%s1 + $0x164] sm:$0xf]
  %v167 = vld [vmem:[%s1 + $0x168] sm:$0xf]
  %v168 = vld [vmem:[%s1 + $0x16c] sm:$0xf]
  %v169 = vld [vmem:[%s1 + $0x170] sm:$0xf]
  %v170 = vld [vmem:[%s1 + $0x174] sm:$0xf]
  %v171 = vld [vmem:[%s1 + $0x178] sm:$0xf]
  %v172 = vld [vmem:[%s1 + $0x17c] sm:$0xf]
  %v173 = vld [vmem:[%s1 + $0x180] sm:$0xf]
  %v174 = vld [vmem:[%s1 + $0x184] sm:$0xf]
  %v175 = vld [vmem:[%s1 + $0x188] sm:$0xf]
  %v176 = vld [vmem:[%s1 + $0x18c] sm:$0xf]
  %v177 = vld [vmem:[%s1 + $0x190] sm:$0xf]
  %v178 = vld [vmem:[%s1 + $0x194] sm:$0xf]
  %v179 = vld [vmem:[%s1 + $0x198] sm:$0xf]
  %v180 = vld [vmem:[%s1 + $0x19c] sm:$0xf]
  %v181 = vld [vmem:[%s1 + $0x1a0] sm:$0xf]
  %v182 = vld [vmem:[%s1 + $0x1a4] sm:$0xf]
  %v183 = vld [vmem:[%s1 + $0x1a8] sm:$0xf]
  %v184 = vld [vmem:[%s1 + $0x1ac] sm:$0xf]
  %v185 = vld [vmem:[%s1 + $0x1b0] sm:$0xf]
  %v186 = vld [vmem:[%s1 + $0x1b4] sm:$0xf]
  %v187 = vld [vmem:[%s1 + $0x1b8] sm:$0xf]
  %v188 = vld [vmem:[%s1 + $0x1bc] sm:$0xf]
  %v189 = vld [vmem:[%s1 + $0x1c0] sm:$0xf]
  %v190 = vld [vmem:[%s1 + $0x1c4] sm:$0xf]
  %v191 = vld [vmem:[%s1 + $0x1c8] sm:$0xf]
  %v192 = vld [vmem:[%s1 + $0x1cc] sm:$0xf]
  %v193 = vld [vmem:[%s1 + $0x1d0] sm:$0xf]
  %v194 = vld [vmem:[%s1 + $0x1d4] sm:$0xf]
  %v195 = vld [vmem:[%s1 + $0x1d8] sm:$0xf]
  %v196 = vld [vmem:[%s1 + $0x1dc] sm:$0xf]
  %v197 = vld [vmem:[%s1 + $0x1e0] sm:$0xf]
  %v198 = vld [vmem:[%s1 + $0x1e4] sm:$0xf]
  %v199 = vld [vmem:[%s1 + $0x1e8] sm:$0xf]
  %v200 = vld [vmem:[%s1 + $0x1ec] sm:$0xf]
  %v201 = vld [vmem:[%s1 + $0x1f0] sm:$0xf]
  %v202 = vld [vmem:[%s1 + $0x1f4] sm:$0xf]
  %v203 = vld [vmem:[%s1 + $0x1f8] sm:$0xf]
  %v204 = vld [vmem:[%s1 + $0x1fc] sm:$0xf]
  %v205 = vld [vmem:[%s2] sm:$0x1]
  %v207 = vlaneseq
  %v208 = vshrl.u32 %v207, 7
  %v209 = vsub.s32 0, %v208
  %v210 = vrot.slane %v205, %v209
  %v220 = vunpack.c.l.b16 %v69
  %v221 = vunpack.c.h.b16 %v69
  %v222 = vunpack.c.l.b16 %v70
  %v223 = vunpack.c.h.b16 %v70
  %v224 = vunpack.c.l.b16 %v71
  %v225 = vunpack.c.h.b16 %v71
  %v226 = vunpack.c.l.b16 %v72
  %v227 = vunpack.c.h.b16 %v72
  %v228 = vunpack.c.l.b16 %v73
  %v229 = vunpack.c.h.b16 %v73
  %v230 = vunpack.c.l.b16 %v74
  %v231 = vunpack.c.h.b16 %v74
  %v232 = vunpack.c.l.b16 %v75
  %v233 = vunpack.c.h.b16 %v75
  %v234 = vunpack.c.l.b16 %v76
  %v235 = vunpack.c.h.b16 %v76
  %v236 = vpack.c.b16 %v228, %v220
  %v237 = vpack.c.b16 %v229, %v221
  %v238 = vpack.c.b16 %v230, %v222
  %v239 = vpack.c.b16 %v231, %v223
  %v240 = vpack.c.b16 %v232, %v224
  %v241 = vpack.c.b16 %v233, %v225
  %v242 = vpack.c.b16 %v234, %v226
  %v243 = vpack.c.b16 %v235, %v227
  %v380 = vunpack.c.l.b16 %v77
  %v381 = vunpack.c.l.b16 %v78
  %v382 = vunpack.c.l.b16 %v79
  %v383 = vunpack.c.l.b16 %v80
  %v384 = vunpack.c.l.b16 %v81
  %v385 = vunpack.c.l.b16 %v82
  %v386 = vunpack.c.l.b16 %v83
  %v387 = vunpack.c.l.b16 %v84
  %v388 = vunpack.c.l.b16 %v85
  %v389 = vunpack.c.l.b16 %v86
  %v390 = vunpack.c.l.b16 %v87
  %v391 = vunpack.c.l.b16 %v88
  %v392 = vunpack.c.l.b16 %v89
  %v393 = vunpack.c.l.b16 %v90
  %v394 = vunpack.c.l.b16 %v91
  %v395 = vunpack.c.l.b16 %v92
  %v396 = vunpack.c.l.b16 %v93
  %v397 = vunpack.c.l.b16 %v94
  %v398 = vunpack.c.l.b16 %v95
  %v399 = vunpack.c.l.b16 %v96
  %v400 = vunpack.c.l.b16 %v97
  %v401 = vunpack.c.l.b16 %v98
  %v402 = vunpack.c.l.b16 %v99
  %v403 = vunpack.c.l.b16 %v100
  %v404 = vunpack.c.l.b16 %v101
  %v405 = vunpack.c.l.b16 %v102
  %v406 = vunpack.c.l.b16 %v103
  %v407 = vunpack.c.l.b16 %v104
  %v408 = vunpack.c.l.b16 %v105
  %v409 = vunpack.c.l.b16 %v106
  %v410 = vunpack.c.l.b16 %v107
  %v411 = vunpack.c.l.b16 %v108
  %v412 = vunpack.c.l.b16 %v109
  %v413 = vunpack.c.l.b16 %v110
  %v414 = vunpack.c.l.b16 %v111
  %v415 = vunpack.c.l.b16 %v112
  %v416 = vunpack.c.l.b16 %v113
  %v417 = vunpack.c.l.b16 %v114
  %v418 = vunpack.c.l.b16 %v115
  %v419 = vunpack.c.l.b16 %v116
  %v420 = vunpack.c.l.b16 %v117
  %v421 = vunpack.c.l.b16 %v118
  %v422 = vunpack.c.l.b16 %v119
  %v423 = vunpack.c.l.b16 %v120
  %v424 = vunpack.c.l.b16 %v121
  %v425 = vunpack.c.l.b16 %v122
  %v426 = vunpack.c.l.b16 %v123
  %v427 = vunpack.c.l.b16 %v124
  %v428 = vunpack.c.l.b16 %v125
  %v429 = vunpack.c.l.b16 %v126
  %v430 = vunpack.c.l.b16 %v127
  %v431 = vunpack.c.l.b16 %v128
  %v432 = vunpack.c.l.b16 %v129
  %v433 = vunpack.c.l.b16 %v130
  %v434 = vunpack.c.l.b16 %v131
  %v435 = vunpack.c.l.b16 %v132
  %v436 = vunpack.c.l.b16 %v133
  %v437 = vunpack.c.l.b16 %v134
  %v438 = vunpack.c.l.b16 %v135
  %v439 = vunpack.c.l.b16 %v136
  %v440 = vunpack.c.l.b16 %v137
  %v441 = vunpack.c.l.b16 %v138
  %v442 = vunpack.c.l.b16 %v139
  %v443 = vunpack.c.l.b16 %v140
  %v444 = vunpack.c.l.b16 %v141
  %v445 = vunpack.c.l.b16 %v142
  %v446 = vunpack.c.l.b16 %v143
  %v447 = vunpack.c.l.b16 %v144
  %v448 = vunpack.c.l.b16 %v145
  %v449 = vunpack.c.l.b16 %v146
  %v450 = vunpack.c.l.b16 %v147
  %v451 = vunpack.c.l.b16 %v148
  %v452 = vunpack.c.l.b16 %v149
  %v453 = vunpack.c.l.b16 %v150
  %v454 = vunpack.c.l.b16 %v151
  %v455 = vunpack.c.l.b16 %v152
  %v456 = vunpack.c.l.b16 %v153
  %v457 = vunpack.c.l.b16 %v154
  %v458 = vunpack.c.l.b16 %v155
  %v459 = vunpack.c.l.b16 %v156
  %v460 = vunpack.c.l.b16 %v157
  %v461 = vunpack.c.l.b16 %v158
  %v462 = vunpack.c.l.b16 %v159
  %v463 = vunpack.c.l.b16 %v160
  %v464 = vunpack.c.l.b16 %v161
  %v465 = vunpack.c.l.b16 %v162
  %v466 = vunpack.c.l.b16 %v163
  %v467 = vunpack.c.l.b16 %v164
  %v468 = vunpack.c.l.b16 %v165
  %v469 = vunpack.c.l.b16 %v166
  %v470 = vunpack.c.l.b16 %v167
  %v471 = vunpack.c.l.b16 %v168
  %v472 = vunpack.c.l.b16 %v169
  %v473 = vunpack.c.l.b16 %v170
  %v474 = vunpack.c.l.b16 %v171
  %v475 = vunpack.c.l.b16 %v172
  %v476 = vunpack.c.l.b16 %v173
  %v477 = vunpack.c.l.b16 %v174
  %v478 = vunpack.c.l.b16 %v175
  %v479 = vunpack.c.l.b16 %v176
  %v480 = vunpack.c.l.b16 %v177
  %v481 = vunpack.c.l.b16 %v178
  %v482 = vunpack.c.l.b16 %v179
  %v483 = vunpack.c.l.b16 %v180
  %v484 = vunpack.c.l.b16 %v181
  %v485 = vunpack.c.l.b16 %v182
  %v486 = vunpack.c.l.b16 %v183
  %v487 = vunpack.c.l.b16 %v184
  %v488 = vunpack.c.l.b16 %v185
  %v489 = vunpack.c.l.b16 %v186
  %v490 = vunpack.c.l.b16 %v187
  %v491 = vunpack.c.l.b16 %v188
  %v492 = vunpack.c.l.b16 %v189
  %v493 = vunpack.c.l.b16 %v190
  %v494 = vunpack.c.l.b16 %v191
  %v495 = vunpack.c.l.b16 %v192
  %v496 = vunpack.c.l.b16 %v193
  %v497 = vunpack.c.l.b16 %v194
  %v498 = vunpack.c.l.b16 %v195
  %v499 = vunpack.c.l.b16 %v196
  %v500 = vunpack.c.l.b16 %v197
  %v501 = vunpack.c.l.b16 %v198
  %v502 = vunpack.c.l.b16 %v199
  %v503 = vunpack.c.l.b16 %v200
  %v504 = vunpack.c.l.b16 %v201
  %v505 = vunpack.c.l.b16 %v202
  %v506 = vunpack.c.l.b16 %v203
  %v507 = vunpack.c.l.b16 %v204
  %v508 = vpack.c.b16 %v381, %v380
  %v509 = vpack.c.b16 %v383, %v382
  %v510 = vpack.c.b16 %v385, %v384
  %v511 = vpack.c.b16 %v387, %v386
  %v512 = vpack.c.b16 %v389, %v388
  %v513 = vpack.c.b16 %v391, %v390
  %v514 = vpack.c.b16 %v393, %v392
  %v515 = vpack.c.b16 %v395, %v394
  %v516 = vpack.c.b16 %v397, %v396
  %v517 = vpack.c.b16 %v399, %v398
  %v518 = vpack.c.b16 %v401, %v400
  %v519 = vpack.c.b16 %v403, %v402
  %v520 = vpack.c.b16 %v405, %v404
  %v521 = vpack.c.b16 %v407, %v406
  %v522 = vpack.c.b16 %v409, %v408
  %v523 = vpack.c.b16 %v411, %v410
  %v524 = vpack.c.b16 %v413, %v412
  %v525 = vpack.c.b16 %v415, %v414
  %v526 = vpack.c.b16 %v417, %v416
  %v527 = vpack.c.b16 %v419, %v418
  %v528 = vpack.c.b16 %v421, %v420
  %v529 = vpack.c.b16 %v423, %v422
  %v530 = vpack.c.b16 %v425, %v424
  %v531 = vpack.c.b16 %v427, %v426
  %v532 = vpack.c.b16 %v429, %v428
  %v533 = vpack.c.b16 %v431, %v430
  %v534 = vpack.c.b16 %v433, %v432
  %v535 = vpack.c.b16 %v435, %v434
  %v536 = vpack.c.b16 %v437, %v436
  %v537 = vpack.c.b16 %v439, %v438
  %v538 = vpack.c.b16 %v441, %v440
  %v539 = vpack.c.b16 %v443, %v442
  %v540 = vpack.c.b16 %v445, %v444
  %v541 = vpack.c.b16 %v447, %v446
  %v542 = vpack.c.b16 %v449, %v448
  %v543 = vpack.c.b16 %v451, %v450
  %v544 = vpack.c.b16 %v453, %v452
  %v545 = vpack.c.b16 %v455, %v454
  %v546 = vpack.c.b16 %v457, %v456
  %v547 = vpack.c.b16 %v459, %v458
  %v548 = vpack.c.b16 %v461, %v460
  %v549 = vpack.c.b16 %v463, %v462
  %v550 = vpack.c.b16 %v465, %v464
  %v551 = vpack.c.b16 %v467, %v466
  %v552 = vpack.c.b16 %v469, %v468
  %v553 = vpack.c.b16 %v471, %v470
  %v554 = vpack.c.b16 %v473, %v472
  %v555 = vpack.c.b16 %v475, %v474
  %v556 = vpack.c.b16 %v477, %v476
  %v557 = vpack.c.b16 %v479, %v478
  %v558 = vpack.c.b16 %v481, %v480
  %v559 = vpack.c.b16 %v483, %v482
  %v560 = vpack.c.b16 %v485, %v484
  %v561 = vpack.c.b16 %v487, %v486
  %v562 = vpack.c.b16 %v489, %v488
  %v563 = vpack.c.b16 %v491, %v490
  %v564 = vpack.c.b16 %v493, %v492
  %v565 = vpack.c.b16 %v495, %v494
  %v566 = vpack.c.b16 %v497, %v496
  %v567 = vpack.c.b16 %v499, %v498
  %v568 = vpack.c.b16 %v501, %v500
  %v569 = vpack.c.b16 %v503, %v502
  %v570 = vpack.c.b16 %v505, %v504
  %v571 = vpack.c.b16 %v507, %v506
  %636 = vmatprep.subr.bf16.mxu0 0
  %637 = vmatpush1.bf16.msra.mxu0 %v508
  %638 = vmatprep.subr.bf16.mxu0 0
  %639 = vmatpush1.bf16.msra.mxu0 %v509
  %640 = vmatprep.subr.bf16.mxu0 0
  %641 = vmatpush1.bf16.msra.mxu0 %v510
  %642 = vmatprep.subr.bf16.mxu0 0
  %643 = vmatpush1.bf16.msra.mxu0 %v511
  %644 = vmatprep.subr.bf16.mxu0 0
  %645 = vmatpush1.bf16.msra.mxu0 %v512
  %646 = vmatprep.subr.bf16.mxu0 0
  %647 = vmatpush1.bf16.msra.mxu0 %v513
  %648 = vmatprep.subr.bf16.mxu0 0
  %649 = vmatpush1.bf16.msra.mxu0 %v514
  %650 = vmatprep.subr.bf16.mxu0 0
  %651 = vmatpush1.bf16.msra.mxu0 %v515
  %652 = vmatprep.subr.bf16.mxu0 0
  %653 = vmatpush1.bf16.msra.mxu0 %v516
  %654 = vmatprep.subr.bf16.mxu0 0
  %655 = vmatpush1.bf16.msra.mxu0 %v517
  %656 = vmatprep.subr.bf16.mxu0 0
  %657 = vmatpush1.bf16.msra.mxu0 %v518
  %658 = vmatprep.subr.bf16.mxu0 0
  %659 = vmatpush1.bf16.msra.mxu0 %v519
  %660 = vmatprep.subr.bf16.mxu0 0
  %661 = vmatpush1.bf16.msra.mxu0 %v520
  %662 = vmatprep.subr.bf16.mxu0 0
  %663 = vmatpush1.bf16.msra.mxu0 %v521
  %664 = vmatprep.subr.bf16.mxu0 0
  %665 = vmatpush1.bf16.msra.mxu0 %v522
  %666 = vmatprep.subr.bf16.mxu0 0
  %667 = vmatpush1.bf16.msra.mxu0 %v523
  %668 = vmatprep.mubr.bf16.mxu0 %v237
  %669 = vmatmul.mubr.bf16.gmra.mrb[0].mxu0 %v236
  %v670 = vpop.f32.mrb[0].mxu0
  %v671 = vadd.f32 %v210, %v670
  %v672 = vpop.f32.mrb[0].mxu0
  %v673 = vpop.f32.mrb[0].mxu0
  %v674 = vadd.f32 %v210, %v673
  %v675 = vpop.f32.mrb[0].mxu0
  %676 = vdwg.mxu0
  %677 = vmatprep.subr.bf16.mxu0 0
  %678 = vmatpush1.bf16.msra.mxu0 %v524
  %679 = vmatprep.subr.bf16.mxu0 0
  %680 = vmatpush1.bf16.msra.mxu0 %v525
  %681 = vmatprep.subr.bf16.mxu0 0
  %682 = vmatpush1.bf16.msra.mxu0 %v526
  %683 = vmatprep.subr.bf16.mxu0 0
  %684 = vmatpush1.bf16.msra.mxu0 %v527
  %685 = vmatprep.subr.bf16.mxu0 0
  %686 = vmatpush1.bf16.msra.mxu0 %v528
  %687 = vmatprep.subr.bf16.mxu0 0
  %688 = vmatpush1.bf16.msra.mxu0 %v529
  %689 = vmatprep.subr.bf16.mxu0 0
  %690 = vmatpush1.bf16.msra.mxu0 %v530
  %691 = vmatprep.subr.bf16.mxu0 0
  %692 = vmatpush1.bf16.msra.mxu0 %v531
  %693 = vmatprep.subr.bf16.mxu0 0
  %694 = vmatpush1.bf16.msra.mxu0 %v532
  %695 = vmatprep.subr.bf16.mxu0 0
  %696 = vmatpush1.bf16.msra.mxu0 %v533
  %697 = vmatprep.subr.bf16.mxu0 0
  %698 = vmatpush1.bf16.msra.mxu0 %v534
  %699 = vmatprep.subr.bf16.mxu0 0
  %700 = vmatpush1.bf16.msra.mxu0 %v535
  %701 = vmatprep.subr.bf16.mxu0 0
  %702 = vmatpush1.bf16.msra.mxu0 %v536
  %703 = vmatprep.subr.bf16.mxu0 0
  %704 = vmatpush1.bf16.msra.mxu0 %v537
  %705 = vmatprep.subr.bf16.mxu0 0
  %706 = vmatpush1.bf16.msra.mxu0 %v538
  %707 = vmatprep.subr.bf16.mxu0 0
  %708 = vmatpush1.bf16.msra.mxu0 %v539
  %709 = vmatprep.mubr.bf16.mxu0 %v239
  %710 = vmatmul.mubr.bf16.gmra.mrb[0].mxu0 %v238
  %v711 = vpop.f32.mrb[0].mxu0
  %v712 = vadd.f32 %v671, %v711
  %v713 = vpop.f32.mrb[0].mxu0
  %v714 = vpop.f32.mrb[0].mxu0
  %v715 = vadd.f32 %v674, %v714
  %v716 = vpop.f32.mrb[0].mxu0
  %717 = vdwg.mxu0
  %718 = vmatprep.subr.bf16.mxu0 0
  %719 = vmatpush1.bf16.msra.mxu0 %v540
  %720 = vmatprep.subr.bf16.mxu0 0
  %721 = vmatpush1.bf16.msra.mxu0 %v541
  %722 = vmatprep.subr.bf16.mxu0 0
  %723 = vmatpush1.bf16.msra.mxu0 %v542
  %724 = vmatprep.subr.bf16.mxu0 0
  %725 = vmatpush1.bf16.msra.mxu0 %v543
  %726 = vmatprep.subr.bf16.mxu0 0
  %727 = vmatpush1.bf16.msra.mxu0 %v544
  %728 = vmatprep.subr.bf16.mxu0 0
  %729 = vmatpush1.bf16.msra.mxu0 %v545
  %730 = vmatprep.subr.bf16.mxu0 0
  %731 = vmatpush1.bf16.msra.mxu0 %v546
  %732 = vmatprep.subr.bf16.mxu0 0
  %733 = vmatpush1.bf16.msra.mxu0 %v547
  %734 = vmatprep.subr.bf16.mxu0 0
  %735 = vmatpush1.bf16.msra.mxu0 %v548
  %736 = vmatprep.subr.bf16.mxu0 0
  %737 = vmatpush1.bf16.msra.mxu0 %v549
  %738 = vmatprep.subr.bf16.mxu0 0
  %739 = vmatpush1.bf16.msra.mxu0 %v550
  %740 = vmatprep.subr.bf16.mxu0 0
  %741 = vmatpush1.bf16.msra.mxu0 %v551
  %742 = vmatprep.subr.bf16.mxu0 0
  %743 = vmatpush1.bf16.msra.mxu0 %v552
  %744 = vmatprep.subr.bf16.mxu0 0
  %745 = vmatpush1.bf16.msra.mxu0 %v553
  %746 = vmatprep.subr.bf16.mxu0 0
  %747 = vmatpush1.bf16.msra.mxu0 %v554
  %748 = vmatprep.subr.bf16.mxu0 0
  %749 = vmatpush1.bf16.msra.mxu0 %v555
  %750 = vmatprep.mubr.bf16.mxu0 %v241
  %751 = vmatmul.mubr.bf16.gmra.mrb[0].mxu0 %v240
  %v752 = vpop.f32.mrb[0].mxu0
  %v753 = vadd.f32 %v712, %v752
  %v754 = vpop.f32.mrb[0].mxu0
  %v755 = vpop.f32.mrb[0].mxu0
  %v756 = vadd.f32 %v715, %v755
  %v757 = vpop.f32.mrb[0].mxu0
  %758 = vdwg.mxu0
  %759 = vmatprep.subr.bf16.mxu0 0
  %760 = vmatpush1.bf16.msra.mxu0 %v556
  %761 = vmatprep.subr.bf16.mxu0 0
  %762 = vmatpush1.bf16.msra.mxu0 %v557
  %763 = vmatprep.subr.bf16.mxu0 0
  %764 = vmatpush1.bf16.msra.mxu0 %v558
  %765 = vmatprep.subr.bf16.mxu0 0
  %766 = vmatpush1.bf16.msra.mxu0 %v559
  %767 = vmatprep.subr.bf16.mxu0 0
  %768 = vmatpush1.bf16.msra.mxu0 %v560
  %769 = vmatprep.subr.bf16.mxu0 0
  %770 = vmatpush1.bf16.msra.mxu0 %v561
  %771 = vmatprep.subr.bf16.mxu0 0
  %772 = vmatpush1.bf16.msra.mxu0 %v562
  %773 = vmatprep.subr.bf16.mxu0 0
  %774 = vmatpush1.bf16.msra.mxu0 %v563
  %775 = vmatprep.subr.bf16.mxu0 0
  %776 = vmatpush1.bf16.msra.mxu0 %v564
  %777 = vmatprep.subr.bf16.mxu0 0
  %778 = vmatpush1.bf16.msra.mxu0 %v565
  %779 = vmatprep.subr.bf16.mxu0 0
  %780 = vmatpush1.bf16.msra.mxu0 %v566
  %781 = vmatprep.subr.bf16.mxu0 0
  %782 = vmatpush1.bf16.msra.mxu0 %v567
  %783 = vmatprep.subr.bf16.mxu0 0
  %784 = vmatpush1.bf16.msra.mxu0 %v568
  %785 = vmatprep.subr.bf16.mxu0 0
  %786 = vmatpush1.bf16.msra.mxu0 %v569
  %787 = vmatprep.subr.bf16.mxu0 0
  %788 = vmatpush1.bf16.msra.mxu0 %v570
  %789 = vmatprep.subr.bf16.mxu0 0
  %790 = vmatpush1.bf16.msra.mxu0 %v571
  %791 = vmatprep.mubr.bf16.mxu0 %v243
  %792 = vmatmul.mubr.bf16.gmra.mrb[0].mxu0 %v242
  %v793 = vpop.f32.mrb[0].mxu0
  %v794 = vadd.f32 %v753, %v793
  %v795 = vpop.f32.mrb[0].mxu0
  %v796 = vpop.f32.mrb[0].mxu0
  %v797 = vadd.f32 %v756, %v796
  %v798 = vpop.f32.mrb[0].mxu0
  %799 = vdwg.mxu0
  %v800 = vmax.f32 %v794, 0.0
  %v801 = vmax.f32 %v797, 0.0
  %vm802 = vcmask 523264
  %v803 = vsel %vm802, %v800, 0.0
  %804 = vadd.xlane.f32.xlu0 %v803
  %v805 = vpop.xlane.xlu0 %804
  %v806 = vsel %vm802, %v801, 0.0
  %807 = vadd.xlane.f32.xlu0 %v806
  %v808 = vpop.xlane.xlu0 %807
  %v809 = vrcp.pop 64.0
  %v810 = vmul.f32 %v805, %v809
  %v811 = vmul.f32 %v808, %v809
  %v812 = vmul.f32 %v800, %v800
  %v813 = vmul.f32 %v801, %v801
  %v814 = vsel %vm802, %v812, 0.0
  %815 = vadd.xlane.f32.xlu0 %v814
  %v816 = vpop.xlane.xlu0 %815
  %v817 = vsel %vm802, %v813, 0.0
  %818 = vadd.xlane.f32.xlu0 %v817
  %v819 = vpop.xlane.xlu0 %818
  %v820 = vmul.f32 %v816, %v809
  %v821 = vmul.f32 %v819, %v809
  %v822 = vmul.f32 %v810, %v810
  %v823 = vmul.f32 %v811, %v811
  %v824 = vsub.f32 %v820, %v822
  %v825 = vsub.f32 %v821, %v823
  %v826 = vsub.f32 %v800, %v810
  %v827 = vsub.f32 %v801, %v811
  %v828 = vadd.f32 %v824, 1e-05
  %v829 = vadd.f32 %v825, 1e-05
  %v830 = vrsqrt.pop %v828
  %v831 = vrsqrt.pop %v829
  %v832 = vmul.f32 %v826, %v830
  %v833 = vmul.f32 %v827, %v831
  %v834 = vld [vmem:[%s3] sm:$0x1]
  %v836 = vlaneseq
  %v837 = vshrl.u32 %v836, 7
  %v838 = vsub.s32 0, %v837
  %v839 = vrot.slane %v834, %v838
  %v841 = vmul.f32 %v832, %v839
  %v842 = vmul.f32 %v833, %v839
  %v843 = vld [vmem:[%s4] sm:$0x1]
  %v845 = vlaneseq
  %v846 = vshrl.u32 %v845, 7
  %v847 = vsub.s32 0, %v846
  %v848 = vrot.slane %v843, %v847
  %v850 = vadd.f32 %v841, %v848
  %v851 = vadd.f32 %v842, %v848
  %v852 = vpack.c.bf16 %v851, %v850
  %v853 = vld [vmem:[%s5] sm:$0xf]
  %v854 = vld [vmem:[%s5 + $0x4] sm:$0xf]
  %v855 = vld [vmem:[%s5 + $0x8] sm:$0xf]
  %v856 = vld [vmem:[%s5 + $0xc] sm:$0xf]
  %v857 = vld [vmem:[%s5 + $0x10] sm:$0xf]
  %v858 = vld [vmem:[%s5 + $0x14] sm:$0xf]
  %v859 = vld [vmem:[%s5 + $0x18] sm:$0xf]
  %v860 = vld [vmem:[%s5 + $0x1c] sm:$0xf]
  %v861 = vld [vmem:[%s6] sm:$0x1]
  %v863 = vlaneseq
  %v864 = vshrl.u32 %v863, 7
  %v865 = vsub.s32 0, %v864
  %v866 = vrot.slane %v861, %v865
  %v876 = vunpack.c.l.b16 %v853
  %v877 = vunpack.c.l.b16 %v854
  %v878 = vunpack.c.l.b16 %v855
  %v879 = vunpack.c.l.b16 %v856
  %v880 = vunpack.c.l.b16 %v857
  %v881 = vunpack.c.l.b16 %v858
  %v882 = vunpack.c.l.b16 %v859
  %v883 = vunpack.c.l.b16 %v860
  %v884 = vpack.c.b16 %v877, %v876
  %v885 = vpack.c.b16 %v879, %v878
  %v886 = vpack.c.b16 %v881, %v880
  %v887 = vpack.c.b16 %v883, %v882
  %v893 = vsel %vm802, %v852, 0
  %895 = vmatprep.subr.bf16.mxu0 0
  %896 = vmatpush1.bf16.msra.mxu0 %v884
  %897 = vmatprep.subr.bf16.mxu0 0
  %898 = vmatpush1.bf16.msra.mxu0 %v885
  %899 = vmatprep.subr.bf16.mxu0 0
  %900 = vmatpush1.bf16.msra.mxu0 %v886
  %901 = vmatprep.subr.bf16.mxu0 0
  %902 = vmatpush1.bf16.msra.mxu0 %v887
  %903 = vmatprep.subr.bf16.mxu0 0
  %904 = vmatpush1.bf16.msra.mxu0 0
  %905 = vmatprep.subr.bf16.mxu0 0
  %906 = vmatpush1.bf16.msra.mxu0 0
  %907 = vmatprep.subr.bf16.mxu0 0
  %908 = vmatpush1.bf16.msra.mxu0 0
  %909 = vmatprep.subr.bf16.mxu0 0
  %910 = vmatpush1.bf16.msra.mxu0 0
  %911 = vmatprep.subr.bf16.mxu0 0
  %912 = vmatpush1.bf16.msra.mxu0 0
  %913 = vmatprep.subr.bf16.mxu0 0
  %914 = vmatpush1.bf16.msra.mxu0 0
  %915 = vmatprep.subr.bf16.mxu0 0
  %916 = vmatpush1.bf16.msra.mxu0 0
  %917 = vmatprep.subr.bf16.mxu0 0
  %918 = vmatpush1.bf16.msra.mxu0 0
  %919 = vmatprep.subr.bf16.mxu0 0
  %920 = vmatpush1.bf16.msra.mxu0 0
  %921 = vmatprep.subr.bf16.mxu0 0
  %922 = vmatpush1.bf16.msra.mxu0 0
  %923 = vmatprep.subr.bf16.mxu0 0
  %924 = vmatpush1.bf16.msra.mxu0 0
  %925 = vmatprep.subr.bf16.mxu0 0
  %926 = vmatpush1.bf16.msra.mxu0 0
  %927 = vmatprep.mubr.bf16.mxu0 0
  %928 = vmatmul.mubr.bf16.gmra.mrb[0].mxu0 %v893
  %v929 = vpop.f32.mrb[0].mxu0
  %v930 = vadd.f32 %v866, %v929
  %v931 = vpop.f32.mrb[0].mxu0
  %v932 = vpop.f32.mrb[0].mxu0
  %v933 = vadd.f32 %v866, %v932
  %v934 = vpop.f32.mrb[0].mxu0
  %935 = vdwg.mxu0
  %v936 = vmax.f32 %v930, 0.0
  %v937 = vmax.f32 %v933, 0.0
  %vm938 = vcmask 261120
  %v939 = vsel %vm938, %v936, 0.0
  %940 = vadd.xlane.f32.xlu0 %v939
  %v941 = vpop.xlane.xlu0 %940
  %v942 = vsel %vm938, %v937, 0.0
  %943 = vadd.xlane.f32.xlu0 %v942
  %v944 = vpop.xlane.xlu0 %943
  %v945 = vrcp.pop 32.0
  %v946 = vmul.f32 %v941, %v945
  %v947 = vmul.f32 %v944, %v945
  %v948 = vmul.f32 %v936, %v936
  %v949 = vmul.f32 %v937, %v937
  %v950 = vsel %vm938, %v948, 0.0
  %951 = vadd.xlane.f32.xlu0 %v950
  %v952 = vpop.xlane.xlu0 %951
  %v953 = vsel %vm938, %v949, 0.0
  %954 = vadd.xlane.f32.xlu0 %v953
  %v955 = vpop.xlane.xlu0 %954
  %v956 = vmul.f32 %v952, %v945
  %v957 = vmul.f32 %v955, %v945
  %v958 = vmul.f32 %v946, %v946
  %v959 = vmul.f32 %v947, %v947
  %v960 = vsub.f32 %v956, %v958
  %v961 = vsub.f32 %v957, %v959
  %v962 = vsub.f32 %v936, %v946
  %v963 = vsub.f32 %v937, %v947
  %v964 = vadd.f32 %v960, 1e-05
  %v965 = vadd.f32 %v961, 1e-05
  %v966 = vrsqrt.pop %v964
  %v967 = vrsqrt.pop %v965
  %v968 = vmul.f32 %v962, %v966
  %v969 = vmul.f32 %v963, %v967
  %v970 = vld [vmem:[%s7] sm:$0x1]
  %v972 = vlaneseq
  %v973 = vshrl.u32 %v972, 7
  %v974 = vsub.s32 0, %v973
  %v975 = vrot.slane %v970, %v974
  %v977 = vmul.f32 %v968, %v975
  %v978 = vmul.f32 %v969, %v975
  %v979 = vld [vmem:[%s8] sm:$0x1]
  %v981 = vlaneseq
  %v982 = vshrl.u32 %v981, 7
  %v983 = vsub.s32 0, %v982
  %v984 = vrot.slane %v979, %v983
  %v986 = vadd.f32 %v977, %v984
  %v987 = vadd.f32 %v978, %v984
  %v988 = vpack.c.bf16 %v987, %v986
  %v989 = vld [vmem:[%s9] sm:$0xf]
  %v990 = vld [vmem:[%s9 + $0x4] sm:$0xf]
  %v991 = vld [vmem:[%s9 + $0x8] sm:$0xf]
  %v992 = vld [vmem:[%s9 + $0xc] sm:$0xf]
  %v993 = vld [vmem:[%s10] sm:$0x1]
  %v995 = vlaneseq
  %v996 = vshrl.u32 %v995, 7
  %v997 = vsub.s32 0, %v996
  %v998 = vrot.slane %v993, %v997
  %v1004 = vunpack.c.l.b16 %v989
  %v1005 = vunpack.c.l.b16 %v990
  %v1006 = vunpack.c.l.b16 %v991
  %v1007 = vunpack.c.l.b16 %v992
  %v1008 = vpack.c.b16 %v1005, %v1004
  %v1009 = vpack.c.b16 %v1007, %v1006
  %v1013 = vsel %vm938, %v988, 0
  %1015 = vmatprep.subr.bf16.mxu0 0
  %1016 = vmatpush1.bf16.msra.mxu0 %v1008
  %1017 = vmatprep.subr.bf16.mxu0 0
  %1018 = vmatpush1.bf16.msra.mxu0 %v1009
  %1019 = vmatprep.subr.bf16.mxu0 0
  %1020 = vmatpush1.bf16.msra.mxu0 0
  %1021 = vmatprep.subr.bf16.mxu0 0
  %1022 = vmatpush1.bf16.msra.mxu0 0
  %1023 = vmatprep.subr.bf16.mxu0 0
  %1024 = vmatpush1.bf16.msra.mxu0 0
  %1025 = vmatprep.subr.bf16.mxu0 0
  %1026 = vmatpush1.bf16.msra.mxu0 0
  %1027 = vmatprep.subr.bf16.mxu0 0
  %1028 = vmatpush1.bf16.msra.mxu0 0
  %1029 = vmatprep.subr.bf16.mxu0 0
  %1030 = vmatpush1.bf16.msra.mxu0 0
  %1031 = vmatprep.subr.bf16.mxu0 0
  %1032 = vmatpush1.bf16.msra.mxu0 0
  %1033 = vmatprep.subr.bf16.mxu0 0
  %1034 = vmatpush1.bf16.msra.mxu0 0
  %1035 = vmatprep.subr.bf16.mxu0 0
  %1036 = vmatpush1.bf16.msra.mxu0 0
  %1037 = vmatprep.subr.bf16.mxu0 0
  %1038 = vmatpush1.bf16.msra.mxu0 0
  %1039 = vmatprep.subr.bf16.mxu0 0
  %1040 = vmatpush1.bf16.msra.mxu0 0
  %1041 = vmatprep.subr.bf16.mxu0 0
  %1042 = vmatpush1.bf16.msra.mxu0 0
  %1043 = vmatprep.subr.bf16.mxu0 0
  %1044 = vmatpush1.bf16.msra.mxu0 0
  %1045 = vmatprep.subr.bf16.mxu0 0
  %1046 = vmatpush1.bf16.msra.mxu0 0
  %1047 = vmatprep.mubr.bf16.mxu0 0
  %1048 = vmatmul.mubr.bf16.gmra.mrb[0].mxu0 %v1013
  %v1049 = vpop.f32.mrb[0].mxu0
  %v1050 = vadd.f32 %v998, %v1049
  %v1051 = vpop.f32.mrb[0].mxu0
  %v1052 = vpop.f32.mrb[0].mxu0
  %v1053 = vadd.f32 %v998, %v1052
  %v1054 = vpop.f32.mrb[0].mxu0
  %1055 = vdwg.mxu0
  %v1056 = vpack.c.bf16 %v1053, %v1050
  %v1057 = vld [vmem:[%s11] sm:$0x1]
  %v1058 = vld [vmem:[%s12] sm:$0x1]
  %v1060 = vlaneseq
  %v1061 = vshrl.u32 %v1060, 7
  %v1062 = vsub.s32 0, %v1061
  %v1063 = vrot.slane %v1058, %v1062
  %vm1065 = vcmask 15360
  %v1067 = vsel %vm1065, %v1056, 0
  %vm1069 = vcmask 1040384
  %v1071 = vsel %vm1069, %v1057, 0
  %1073 = vmatprep.subr.bf16.mxu0 0
  %1074 = vmatpush1.bf16.msra.mxu0 %v1071
  %1075 = vmatprep.subr.bf16.mxu0 0
  %1076 = vmatpush1.bf16.msra.mxu0 0
  %1077 = vmatprep.subr.bf16.mxu0 0
  %1078 = vmatpush1.bf16.msra.mxu0 0
  %1079 = vmatprep.subr.bf16.mxu0 0
  %1080 = vmatpush1.bf16.msra.mxu0 0
  %1081 = vmatprep.subr.bf16.mxu0 0
  %1082 = vmatpush1.bf16.msra.mxu0 0
  %1083 = vmatprep.subr.bf16.mxu0 0
  %1084 = vmatpush1.bf16.msra.mxu0 0
  %1085 = vmatprep.subr.bf16.mxu0 0
  %1086 = vmatpush1.bf16.msra.mxu0 0
  %1087 = vmatprep.subr.bf16.mxu0 0
  %1088 = vmatpush1.bf16.msra.mxu0 0
  %1089 = vmatprep.subr.bf16.mxu0 0
  %1090 = vmatpush1.bf16.msra.mxu0 0
  %1091 = vmatprep.subr.bf16.mxu0 0
  %1092 = vmatpush1.bf16.msra.mxu0 0
  %1093 = vmatprep.subr.bf16.mxu0 0
  %1094 = vmatpush1.bf16.msra.mxu0 0
  %1095 = vmatprep.subr.bf16.mxu0 0
  %1096 = vmatpush1.bf16.msra.mxu0 0
  %1097 = vmatprep.subr.bf16.mxu0 0
  %1098 = vmatpush1.bf16.msra.mxu0 0
  %1099 = vmatprep.subr.bf16.mxu0 0
  %1100 = vmatpush1.bf16.msra.mxu0 0
  %1101 = vmatprep.subr.bf16.mxu0 0
  %1102 = vmatpush1.bf16.msra.mxu0 0
  %1103 = vmatprep.subr.bf16.mxu0 0
  %1104 = vmatpush1.bf16.msra.mxu0 0
  %1105 = vmatprep.mubr.bf16.mxu0 0
  %1106 = vmatmul.mubr.bf16.gmra.mrb[0].mxu0 %v1067
  %v1107 = vpop.f32.mrb[0].mxu0
  %v1108 = vadd.f32 %v1063, %v1107
  %v1109 = vpop.f32.mrb[0].mxu0
  %v1110 = vpop.f32.mrb[0].mxu0
  %v1111 = vadd.f32 %v1063, %v1110
  %v1112 = vpop.f32.mrb[0].mxu0
  %1113 = vdwg.mxu0
  %v1114 = vmax.f32 %v1108, 0.0
  %v1115 = vmax.f32 %v1111, 0.0
  %v1116 = vsel %vm938, %v1114, 0.0
  %1117 = vadd.xlane.f32.xlu0 %v1116
  %v1118 = vpop.xlane.xlu0 %1117
  %v1119 = vsel %vm938, %v1115, 0.0
  %1120 = vadd.xlane.f32.xlu0 %v1119
  %v1121 = vpop.xlane.xlu0 %1120
  %v1122 = vmul.f32 %v1118, %v945
  %v1123 = vmul.f32 %v1121, %v945
  %v1124 = vmul.f32 %v1114, %v1114
  %v1125 = vmul.f32 %v1115, %v1115
  %v1126 = vsel %vm938, %v1124, 0.0
  %1127 = vadd.xlane.f32.xlu0 %v1126
  %v1128 = vpop.xlane.xlu0 %1127
  %v1129 = vsel %vm938, %v1125, 0.0
  %1130 = vadd.xlane.f32.xlu0 %v1129
  %v1131 = vpop.xlane.xlu0 %1130
  %v1132 = vmul.f32 %v1128, %v945
  %v1133 = vmul.f32 %v1131, %v945
  %v1134 = vmul.f32 %v1122, %v1122
  %v1135 = vmul.f32 %v1123, %v1123
  %v1136 = vsub.f32 %v1132, %v1134
  %v1137 = vsub.f32 %v1133, %v1135
  %v1138 = vsub.f32 %v1114, %v1122
  %v1139 = vsub.f32 %v1115, %v1123
  %v1140 = vadd.f32 %v1136, 1e-05
  %v1141 = vadd.f32 %v1137, 1e-05
  %v1142 = vrsqrt.pop %v1140
  %v1143 = vrsqrt.pop %v1141
  %v1144 = vmul.f32 %v1138, %v1142
  %v1145 = vmul.f32 %v1139, %v1143
  %v1146 = vld [vmem:[%s13] sm:$0x1]
  %v1148 = vlaneseq
  %v1149 = vshrl.u32 %v1148, 7
  %v1150 = vsub.s32 0, %v1149
  %v1151 = vrot.slane %v1146, %v1150
  %v1153 = vmul.f32 %v1144, %v1151
  %v1154 = vmul.f32 %v1145, %v1151
  %v1155 = vld [vmem:[%s14] sm:$0x1]
  %v1157 = vlaneseq
  %v1158 = vshrl.u32 %v1157, 7
  %v1159 = vsub.s32 0, %v1158
  %v1160 = vrot.slane %v1155, %v1159
  %v1162 = vadd.f32 %v1153, %v1160
  %v1163 = vadd.f32 %v1154, %v1160
  %v1164 = vpack.c.bf16 %v1163, %v1162
  %v1165 = vld [vmem:[%s15] sm:$0xf]
  %v1166 = vld [vmem:[%s15 + $0x4] sm:$0xf]
  %v1167 = vld [vmem:[%s15 + $0x8] sm:$0xf]
  %v1168 = vld [vmem:[%s15 + $0xc] sm:$0xf]
  %v1169 = vld [vmem:[%s16] sm:$0x1]
  %v1171 = vlaneseq
  %v1172 = vshrl.u32 %v1171, 7
  %v1173 = vsub.s32 0, %v1172
  %v1174 = vrot.slane %v1169, %v1173
  %v1180 = vunpack.c.l.b16 %v1165
  %v1181 = vunpack.c.l.b16 %v1166
  %v1182 = vunpack.c.l.b16 %v1167
  %v1183 = vunpack.c.l.b16 %v1168
  %v1184 = vpack.c.b16 %v1181, %v1180
  %v1185 = vpack.c.b16 %v1183, %v1182
  %v1189 = vsel %vm938, %v1164, 0
  %1191 = vmatprep.subr.bf16.mxu0 0
  %1192 = vmatpush1.bf16.msra.mxu0 %v1184
  %1193 = vmatprep.subr.bf16.mxu0 0
  %1194 = vmatpush1.bf16.msra.mxu0 %v1185
  %1195 = vmatprep.subr.bf16.mxu0 0
  %1196 = vmatpush1.bf16.msra.mxu0 0
  %1197 = vmatprep.subr.bf16.mxu0 0
  %1198 = vmatpush1.bf16.msra.mxu0 0
  %1199 = vmatprep.subr.bf16.mxu0 0
  %1200 = vmatpush1.bf16.msra.mxu0 0
  %1201 = vmatprep.subr.bf16.mxu0 0
  %1202 = vmatpush1.bf16.msra.mxu0 0
  %1203 = vmatprep.subr.bf16.mxu0 0
  %1204 = vmatpush1.bf16.msra.mxu0 0
  %1205 = vmatprep.subr.bf16.mxu0 0
  %1206 = vmatpush1.bf16.msra.mxu0 0
  %1207 = vmatprep.subr.bf16.mxu0 0
  %1208 = vmatpush1.bf16.msra.mxu0 0
  %1209 = vmatprep.subr.bf16.mxu0 0
  %1210 = vmatpush1.bf16.msra.mxu0 0
  %1211 = vmatprep.subr.bf16.mxu0 0
  %1212 = vmatpush1.bf16.msra.mxu0 0
  %1213 = vmatprep.subr.bf16.mxu0 0
  %1214 = vmatpush1.bf16.msra.mxu0 0
  %1215 = vmatprep.subr.bf16.mxu0 0
  %1216 = vmatpush1.bf16.msra.mxu0 0
  %1217 = vmatprep.subr.bf16.mxu0 0
  %1218 = vmatpush1.bf16.msra.mxu0 0
  %1219 = vmatprep.subr.bf16.mxu0 0
  %1220 = vmatpush1.bf16.msra.mxu0 0
  %1221 = vmatprep.subr.bf16.mxu0 0
  %1222 = vmatpush1.bf16.msra.mxu0 0
  %1223 = vmatprep.mubr.bf16.mxu0 0
  %1224 = vmatmul.mubr.bf16.gmra.mrb[0].mxu0 %v1189
  %v1225 = vpop.f32.mrb[0].mxu0
  %v1226 = vadd.f32 %v1174, %v1225
  %v1227 = vpop.f32.mrb[0].mxu0
  %v1228 = vpop.f32.mrb[0].mxu0
  %v1229 = vadd.f32 %v1174, %v1228
  %v1230 = vpop.f32.mrb[0].mxu0
  %1231 = vdwg.mxu0
  %v1232 = vmax.f32 %v1226, 0.0
  %v1233 = vmax.f32 %v1229, 0.0
  %v1234 = vsel %vm802, %v1232, 0.0
  %1235 = vadd.xlane.f32.xlu0 %v1234
  %v1236 = vpop.xlane.xlu0 %1235
  %v1237 = vsel %vm802, %v1233, 0.0
  %1238 = vadd.xlane.f32.xlu0 %v1237
  %v1239 = vpop.xlane.xlu0 %1238
  %v1240 = vmul.f32 %v1236, %v809
  %v1241 = vmul.f32 %v1239, %v809
  %v1242 = vmul.f32 %v1232, %v1232
  %v1243 = vmul.f32 %v1233, %v1233
  %v1244 = vsel %vm802, %v1242, 0.0
  %1245 = vadd.xlane.f32.xlu0 %v1244
  %v1246 = vpop.xlane.xlu0 %1245
  %v1247 = vsel %vm802, %v1243, 0.0
  %1248 = vadd.xlane.f32.xlu0 %v1247
  %v1249 = vpop.xlane.xlu0 %1248
  %v1250 = vmul.f32 %v1246, %v809
  %v1251 = vmul.f32 %v1249, %v809
  %v1252 = vmul.f32 %v1240, %v1240
  %v1253 = vmul.f32 %v1241, %v1241
  %v1254 = vsub.f32 %v1250, %v1252
  %v1255 = vsub.f32 %v1251, %v1253
  %v1256 = vsub.f32 %v1232, %v1240
  %v1257 = vsub.f32 %v1233, %v1241
  %v1258 = vadd.f32 %v1254, 1e-05
  %v1259 = vadd.f32 %v1255, 1e-05
  %v1260 = vrsqrt.pop %v1258
  %v1261 = vrsqrt.pop %v1259
  %v1262 = vmul.f32 %v1256, %v1260
  %v1263 = vmul.f32 %v1257, %v1261
  %v1264 = vld [vmem:[%s17] sm:$0x1]
  %v1266 = vlaneseq
  %v1267 = vshrl.u32 %v1266, 7
  %v1268 = vsub.s32 0, %v1267
  %v1269 = vrot.slane %v1264, %v1268
  %v1271 = vmul.f32 %v1262, %v1269
  %v1272 = vmul.f32 %v1263, %v1269
  %v1273 = vld [vmem:[%s18] sm:$0x1]
  %v1275 = vlaneseq
  %v1276 = vshrl.u32 %v1275, 7
  %v1277 = vsub.s32 0, %v1276
  %v1278 = vrot.slane %v1273, %v1277
  %v1280 = vadd.f32 %v1271, %v1278
  %v1281 = vadd.f32 %v1272, %v1278
  %v1282 = vpack.c.bf16 %v1281, %v1280
  %v1283 = vld [vmem:[%s19] sm:$0xff]
  %v1284 = vld [vmem:[%s19 + $0x8] sm:$0xff]
  %v1285 = vld [vmem:[%s19 + $0x10] sm:$0xff]
  %v1286 = vld [vmem:[%s19 + $0x18] sm:$0xff]
  %v1287 = vld [vmem:[%s19 + $0x20] sm:$0xff]
  %v1288 = vld [vmem:[%s19 + $0x28] sm:$0xff]
  %v1289 = vld [vmem:[%s19 + $0x30] sm:$0xff]
  %v1290 = vld [vmem:[%s19 + $0x38] sm:$0xff]
  %v1291 = vld [vmem:[%s19 + $0x40] sm:$0xff]
  %v1292 = vld [vmem:[%s19 + $0x48] sm:$0xff]
  %v1293 = vld [vmem:[%s19 + $0x50] sm:$0xff]
  %v1294 = vld [vmem:[%s19 + $0x58] sm:$0xff]
  %v1295 = vld [vmem:[%s19 + $0x60] sm:$0xff]
  %v1296 = vld [vmem:[%s19 + $0x68] sm:$0xff]
  %v1297 = vld [vmem:[%s19 + $0x70] sm:$0xff]
  %v1298 = vld [vmem:[%s19 + $0x78] sm:$0xff]
  %v1299 = vld [vmem:[%s19 + $0x80] sm:$0xff]
  %v1300 = vld [vmem:[%s19 + $0x88] sm:$0xff]
  %v1301 = vld [vmem:[%s19 + $0x90] sm:$0xff]
  %v1302 = vld [vmem:[%s19 + $0x98] sm:$0xff]
  %v1303 = vld [vmem:[%s19 + $0xa0] sm:$0xff]
  %v1304 = vld [vmem:[%s19 + $0xa8] sm:$0xff]
  %v1305 = vld [vmem:[%s19 + $0xb0] sm:$0xff]
  %v1306 = vld [vmem:[%s19 + $0xb8] sm:$0xff]
  %v1307 = vld [vmem:[%s19 + $0xc0] sm:$0xff]
  %v1308 = vld [vmem:[%s19 + $0xc8] sm:$0xff]
  %v1309 = vld [vmem:[%s19 + $0xd0] sm:$0xff]
  %v1310 = vld [vmem:[%s19 + $0xd8] sm:$0xff]
  %v1311 = vld [vmem:[%s19 + $0xe0] sm:$0xff]
  %v1312 = vld [vmem:[%s19 + $0xe8] sm:$0xff]
  %v1313 = vld [vmem:[%s19 + $0xf0] sm:$0xff]
  %v1314 = vld [vmem:[%s19 + $0xf8] sm:$0xff]
  %v1315 = vld [vmem:[%s20] sm:$0xff]
  %v1317 = vlaneseq
  %v1318 = vshrl.u32 %v1317, 7
  %v1319 = vsub.s32 0, %v1318
  %v1320 = vrot.slane %v1315, %v1319
  %v1321 = vlaneseq
  %v1322 = vshrl.u32 %v1321, 7
  %v1323 = vsub.s32 1, %v1322
  %v1324 = vrot.slane %v1315, %v1323
  %v1325 = vlaneseq
  %v1326 = vshrl.u32 %v1325, 7
  %v1327 = vsub.s32 2, %v1326
  %v1328 = vrot.slane %v1315, %v1327
  %v1329 = vlaneseq
  %v1330 = vshrl.u32 %v1329, 7
  %v1331 = vsub.s32 3, %v1330
  %v1332 = vrot.slane %v1315, %v1331
  %v1333 = vlaneseq
  %v1334 = vshrl.u32 %v1333, 7
  %v1335 = vsub.s32 4, %v1334
  %v1336 = vrot.slane %v1315, %v1335
  %v1337 = vlaneseq
  %v1338 = vshrl.u32 %v1337, 7
  %v1339 = vsub.s32 5, %v1338
  %v1340 = vrot.slane %v1315, %v1339
  %v1341 = vlaneseq
  %v1342 = vshrl.u32 %v1341, 7
  %v1343 = vsub.s32 6, %v1342
  %v1344 = vrot.slane %v1315, %v1343
  %v1345 = vlaneseq
  %v1346 = vshrl.u32 %v1345, 7
  %v1347 = vsub.s32 7, %v1346
  %v1348 = vrot.slane %v1315, %v1347
  %v1389 = vunpack.c.l.b16 %v1283
  %v1390 = vunpack.c.h.b16 %v1283
  %v1391 = vunpack.c.l.b16 %v1284
  %v1392 = vunpack.c.h.b16 %v1284
  %v1393 = vunpack.c.l.b16 %v1285
  %v1394 = vunpack.c.h.b16 %v1285
  %v1395 = vunpack.c.l.b16 %v1286
  %v1396 = vunpack.c.h.b16 %v1286
  %v1397 = vunpack.c.l.b16 %v1287
  %v1398 = vunpack.c.h.b16 %v1287
  %v1399 = vunpack.c.l.b16 %v1288
  %v1400 = vunpack.c.h.b16 %v1288
  %v1401 = vunpack.c.l.b16 %v1289
  %v1402 = vunpack.c.h.b16 %v1289
  %v1403 = vunpack.c.l.b16 %v1290
  %v1404 = vunpack.c.h.b16 %v1290
  %v1405 = vunpack.c.l.b16 %v1291
  %v1406 = vunpack.c.h.b16 %v1291
  %v1407 = vunpack.c.l.b16 %v1292
  %v1408 = vunpack.c.h.b16 %v1292
  %v1409 = vunpack.c.l.b16 %v1293
  %v1410 = vunpack.c.h.b16 %v1293
  %v1411 = vunpack.c.l.b16 %v1294
  %v1412 = vunpack.c.h.b16 %v1294
  %v1413 = vunpack.c.l.b16 %v1295
  %v1414 = vunpack.c.h.b16 %v1295
  %v1415 = vunpack.c.l.b16 %v1296
  %v1416 = vunpack.c.h.b16 %v1296
  %v1417 = vunpack.c.l.b16 %v1297
  %v1418 = vunpack.c.h.b16 %v1297
  %v1419 = vunpack.c.l.b16 %v1298
  %v1420 = vunpack.c.h.b16 %v1298
  %v1421 = vunpack.c.l.b16 %v1299
  %v1422 = vunpack.c.h.b16 %v1299
  %v1423 = vunpack.c.l.b16 %v1300
  %v1424 = vunpack.c.h.b16 %v1300
  %v1425 = vunpack.c.l.b16 %v1301
  %v1426 = vunpack.c.h.b16 %v1301
  %v1427 = vunpack.c.l.b16 %v1302
  %v1428 = vunpack.c.h.b16 %v1302
  %v1429 = vunpack.c.l.b16 %v1303
  %v1430 = vunpack.c.h.b16 %v1303
  %v1431 = vunpack.c.l.b16 %v1304
  %v1432 = vunpack.c.h.b16 %v1304
  %v1433 = vunpack.c.l.b16 %v1305
  %v1434 = vunpack.c.h.b16 %v1305
  %v1435 = vunpack.c.l.b16 %v1306
  %v1436 = vunpack.c.h.b16 %v1306
  %v1437 = vunpack.c.l.b16 %v1307
  %v1438 = vunpack.c.h.b16 %v1307
  %v1439 = vunpack.c.l.b16 %v1308
  %v1440 = vunpack.c.h.b16 %v1308
  %v1441 = vunpack.c.l.b16 %v1309
  %v1442 = vunpack.c.h.b16 %v1309
  %v1443 = vunpack.c.l.b16 %v1310
  %v1444 = vunpack.c.h.b16 %v1310
  %v1445 = vunpack.c.l.b16 %v1311
  %v1446 = vunpack.c.h.b16 %v1311
  %v1447 = vunpack.c.l.b16 %v1312
  %v1448 = vunpack.c.h.b16 %v1312
  %v1449 = vunpack.c.l.b16 %v1313
  %v1450 = vunpack.c.h.b16 %v1313
  %v1451 = vunpack.c.l.b16 %v1314
  %v1452 = vunpack.c.h.b16 %v1314
  %v1453 = vpack.c.b16 %v1397, %v1389
  %v1454 = vpack.c.b16 %v1398, %v1390
  %v1455 = vpack.c.b16 %v1399, %v1391
  %v1456 = vpack.c.b16 %v1400, %v1392
  %v1457 = vpack.c.b16 %v1401, %v1393
  %v1458 = vpack.c.b16 %v1402, %v1394
  %v1459 = vpack.c.b16 %v1403, %v1395
  %v1460 = vpack.c.b16 %v1404, %v1396
  %v1461 = vpack.c.b16 %v1413, %v1405
  %v1462 = vpack.c.b16 %v1414, %v1406
  %v1463 = vpack.c.b16 %v1415, %v1407
  %v1464 = vpack.c.b16 %v1416, %v1408
  %v1465 = vpack.c.b16 %v1417, %v1409
  %v1466 = vpack.c.b16 %v1418, %v1410
  %v1467 = vpack.c.b16 %v1419, %v1411
  %v1468 = vpack.c.b16 %v1420, %v1412
  %v1469 = vpack.c.b16 %v1429, %v1421
  %v1470 = vpack.c.b16 %v1430, %v1422
  %v1471 = vpack.c.b16 %v1431, %v1423
  %v1472 = vpack.c.b16 %v1432, %v1424
  %v1473 = vpack.c.b16 %v1433, %v1425
  %v1474 = vpack.c.b16 %v1434, %v1426
  %v1475 = vpack.c.b16 %v1435, %v1427
  %v1476 = vpack.c.b16 %v1436, %v1428
  %v1477 = vpack.c.b16 %v1445, %v1437
  %v1478 = vpack.c.b16 %v1446, %v1438
  %v1479 = vpack.c.b16 %v1447, %v1439
  %v1480 = vpack.c.b16 %v1448, %v1440
  %v1481 = vpack.c.b16 %v1449, %v1441
  %v1482 = vpack.c.b16 %v1450, %v1442
  %v1483 = vpack.c.b16 %v1451, %v1443
  %v1484 = vpack.c.b16 %v1452, %v1444
  %v1518 = vsel %vm802, %v1282, 0
  %1520 = vmatprep.subr.bf16.mxu0 %v1454
  %1521 = vmatpush1.bf16.msra.mxu0 %v1453
  %1522 = vmatprep.subr.bf16.mxu0 %v1462
  %1523 = vmatpush1.bf16.msra.mxu0 %v1461
  %1524 = vmatprep.subr.bf16.mxu0 %v1470
  %1525 = vmatpush1.bf16.msra.mxu0 %v1469
  %1526 = vmatprep.subr.bf16.mxu0 %v1478
  %1527 = vmatpush1.bf16.msra.mxu0 %v1477
  %1528 = vmatprep.subr.bf16.mxu0 0
  %1529 = vmatpush1.bf16.msra.mxu0 0
  %1530 = vmatprep.subr.bf16.mxu0 0
  %1531 = vmatpush1.bf16.msra.mxu0 0
  %1532 = vmatprep.subr.bf16.mxu0 0
  %1533 = vmatpush1.bf16.msra.mxu0 0
  %1534 = vmatprep.subr.bf16.mxu0 0
  %1535 = vmatpush1.bf16.msra.mxu0 0
  %1536 = vmatprep.subr.bf16.mxu0 0
  %1537 = vmatpush1.bf16.msra.mxu0 0
  %1538 = vmatprep.subr.bf16.mxu0 0
  %1539 = vmatpush1.bf16.msra.mxu0 0
  %1540 = vmatprep.subr.bf16.mxu0 0
  %1541 = vmatpush1.bf16.msra.mxu0 0
  %1542 = vmatprep.subr.bf16.mxu0 0
  %1543 = vmatpush1.bf16.msra.mxu0 0
  %1544 = vmatprep.subr.bf16.mxu0 0
  %1545 = vmatpush1.bf16.msra.mxu0 0
  %1546 = vmatprep.subr.bf16.mxu0 0
  %1547 = vmatpush1.bf16.msra.mxu0 0
  %1548 = vmatprep.subr.bf16.mxu0 0
  %1549 = vmatpush1.bf16.msra.mxu0 0
  %1550 = vmatprep.subr.bf16.mxu0 0
  %1551 = vmatpush1.bf16.msra.mxu0 0
  %1552 = vmatprep.mubr.bf16.mxu0 0
  %1553 = vmatmul.mubr.bf16.gmra.mrb[0].mxu0 %v1518
  %v1554 = vpop.f32.mrb[0].mxu0
  %v1555 = vadd.f32 %v1320, %v1554
  %v1556 = vpop.f32.mrb[0].mxu0
  %v1557 = vadd.f32 %v1324, %v1556
  %v1558 = vpop.f32.mrb[0].mxu0
  %v1559 = vadd.f32 %v1320, %v1558
  %v1560 = vpop.f32.mrb[0].mxu0
  %v1561 = vadd.f32 %v1324, %v1560
  %1562 = vdwg.mxu0
  %1563 = vmatprep.subr.bf16.mxu0 %v1456
  %1564 = vmatpush1.bf16.msra.mxu0 %v1455
  %1565 = vmatprep.subr.bf16.mxu0 %v1464
  %1566 = vmatpush1.bf16.msra.mxu0 %v1463
  %1567 = vmatprep.subr.bf16.mxu0 %v1472
  %1568 = vmatpush1.bf16.msra.mxu0 %v1471
  %1569 = vmatprep.subr.bf16.mxu0 %v1480
  %1570 = vmatpush1.bf16.msra.mxu0 %v1479
  %1571 = vmatprep.subr.bf16.mxu0 0
  %1572 = vmatpush1.bf16.msra.mxu0 0
  %1573 = vmatprep.subr.bf16.mxu0 0
  %1574 = vmatpush1.bf16.msra.mxu0 0
  %1575 = vmatprep.subr.bf16.mxu0 0
  %1576 = vmatpush1.bf16.msra.mxu0 0
  %1577 = vmatprep.subr.bf16.mxu0 0
  %1578 = vmatpush1.bf16.msra.mxu0 0
  %1579 = vmatprep.subr.bf16.mxu0 0
  %1580 = vmatpush1.bf16.msra.mxu0 0
  %1581 = vmatprep.subr.bf16.mxu0 0
  %1582 = vmatpush1.bf16.msra.mxu0 0
  %1583 = vmatprep.subr.bf16.mxu0 0
  %1584 = vmatpush1.bf16.msra.mxu0 0
  %1585 = vmatprep.subr.bf16.mxu0 0
  %1586 = vmatpush1.bf16.msra.mxu0 0
  %1587 = vmatprep.subr.bf16.mxu0 0
  %1588 = vmatpush1.bf16.msra.mxu0 0
  %1589 = vmatprep.subr.bf16.mxu0 0
  %1590 = vmatpush1.bf16.msra.mxu0 0
  %1591 = vmatprep.subr.bf16.mxu0 0
  %1592 = vmatpush1.bf16.msra.mxu0 0
  %1593 = vmatprep.subr.bf16.mxu0 0
  %1594 = vmatpush1.bf16.msra.mxu0 0
  %1595 = vmatprep.mubr.bf16.mxu0 0
  %1596 = vmatmul.mubr.bf16.gmra.mrb[0].mxu0 %v1518
  %v1597 = vpop.f32.mrb[0].mxu0
  %v1598 = vadd.f32 %v1328, %v1597
  %v1599 = vpop.f32.mrb[0].mxu0
  %v1600 = vadd.f32 %v1332, %v1599
  %v1601 = vpop.f32.mrb[0].mxu0
  %v1602 = vadd.f32 %v1328, %v1601
  %v1603 = vpop.f32.mrb[0].mxu0
  %v1604 = vadd.f32 %v1332, %v1603
  %1605 = vdwg.mxu0
  %1606 = vmatprep.subr.bf16.mxu0 %v1458
  %1607 = vmatpush1.bf16.msra.mxu0 %v1457
  %1608 = vmatprep.subr.bf16.mxu0 %v1466
  %1609 = vmatpush1.bf16.msra.mxu0 %v1465
  %1610 = vmatprep.subr.bf16.mxu0 %v1474
  %1611 = vmatpush1.bf16.msra.mxu0 %v1473
  %1612 = vmatprep.subr.bf16.mxu0 %v1482
  %1613 = vmatpush1.bf16.msra.mxu0 %v1481
  %1614 = vmatprep.subr.bf16.mxu0 0
  %1615 = vmatpush1.bf16.msra.mxu0 0
  %1616 = vmatprep.subr.bf16.mxu0 0
  %1617 = vmatpush1.bf16.msra.mxu0 0
  %1618 = vmatprep.subr.bf16.mxu0 0
  %1619 = vmatpush1.bf16.msra.mxu0 0
  %1620 = vmatprep.subr.bf16.mxu0 0
  %1621 = vmatpush1.bf16.msra.mxu0 0
  %1622 = vmatprep.subr.bf16.mxu0 0
  %1623 = vmatpush1.bf16.msra.mxu0 0
  %1624 = vmatprep.subr.bf16.mxu0 0
  %1625 = vmatpush1.bf16.msra.mxu0 0
  %1626 = vmatprep.subr.bf16.mxu0 0
  %1627 = vmatpush1.bf16.msra.mxu0 0
  %1628 = vmatprep.subr.bf16.mxu0 0
  %1629 = vmatpush1.bf16.msra.mxu0 0
  %1630 = vmatprep.subr.bf16.mxu0 0
  %1631 = vmatpush1.bf16.msra.mxu0 0
  %1632 = vmatprep.subr.bf16.mxu0 0
  %1633 = vmatpush1.bf16.msra.mxu0 0
  %1634 = vmatprep.subr.bf16.mxu0 0
  %1635 = vmatpush1.bf16.msra.mxu0 0
  %1636 = vmatprep.subr.bf16.mxu0 0
  %1637 = vmatpush1.bf16.msra.mxu0 0
  %1638 = vmatprep.mubr.bf16.mxu0 0
  %1639 = vmatmul.mubr.bf16.gmra.mrb[0].mxu0 %v1518
  %v1640 = vpop.f32.mrb[0].mxu0
  %v1641 = vadd.f32 %v1336, %v1640
  %v1642 = vpop.f32.mrb[0].mxu0
  %v1643 = vadd.f32 %v1340, %v1642
  %v1644 = vpop.f32.mrb[0].mxu0
  %v1645 = vadd.f32 %v1336, %v1644
  %v1646 = vpop.f32.mrb[0].mxu0
  %v1647 = vadd.f32 %v1340, %v1646
  %1648 = vdwg.mxu0
  %1649 = vmatprep.subr.bf16.mxu0 %v1460
  %1650 = vmatpush1.bf16.msra.mxu0 %v1459
  %1651 = vmatprep.subr.bf16.mxu0 %v1468
  %1652 = vmatpush1.bf16.msra.mxu0 %v1467
  %1653 = vmatprep.subr.bf16.mxu0 %v1476
  %1654 = vmatpush1.bf16.msra.mxu0 %v1475
  %1655 = vmatprep.subr.bf16.mxu0 %v1484
  %1656 = vmatpush1.bf16.msra.mxu0 %v1483
  %1657 = vmatprep.subr.bf16.mxu0 0
  %1658 = vmatpush1.bf16.msra.mxu0 0
  %1659 = vmatprep.subr.bf16.mxu0 0
  %1660 = vmatpush1.bf16.msra.mxu0 0
  %1661 = vmatprep.subr.bf16.mxu0 0
  %1662 = vmatpush1.bf16.msra.mxu0 0
  %1663 = vmatprep.subr.bf16.mxu0 0
  %1664 = vmatpush1.bf16.msra.mxu0 0
  %1665 = vmatprep.subr.bf16.mxu0 0
  %1666 = vmatpush1.bf16.msra.mxu0 0
  %1667 = vmatprep.subr.bf16.mxu0 0
  %1668 = vmatpush1.bf16.msra.mxu0 0
  %1669 = vmatprep.subr.bf16.mxu0 0
  %1670 = vmatpush1.bf16.msra.mxu0 0
  %1671 = vmatprep.subr.bf16.mxu0 0
  %1672 = vmatpush1.bf16.msra.mxu0 0
  %1673 = vmatprep.subr.bf16.mxu0 0
  %1674 = vmatpush1.bf16.msra.mxu0 0
  %1675 = vmatprep.subr.bf16.mxu0 0
  %1676 = vmatpush1.bf16.msra.mxu0 0
  %1677 = vmatprep.subr.bf16.mxu0 0
  %1678 = vmatpush1.bf16.msra.mxu0 0
  %1679 = vmatprep.subr.bf16.mxu0 0
  %1680 = vmatpush1.bf16.msra.mxu0 0
  %1681 = vmatprep.mubr.bf16.mxu0 0
  %1682 = vmatmul.mubr.bf16.gmra.mrb[0].mxu0 %v1518
  %v1683 = vpop.f32.mrb[0].mxu0
  %v1684 = vadd.f32 %v1344, %v1683
  %v1685 = vpop.f32.mrb[0].mxu0
  %v1686 = vadd.f32 %v1348, %v1685
  %v1687 = vpop.f32.mrb[0].mxu0
  %v1688 = vadd.f32 %v1344, %v1687
  %v1689 = vpop.f32.mrb[0].mxu0
  %v1690 = vadd.f32 %v1348, %v1689
  %1691 = vdwg.mxu0
  %v1692 = vsub.f32 0.0, %v1555
  %v1693 = vsub.f32 0.0, %v1557
  %v1694 = vsub.f32 0.0, %v1598
  %v1695 = vsub.f32 0.0, %v1600
  %v1696 = vsub.f32 0.0, %v1641
  %v1697 = vsub.f32 0.0, %v1643
  %v1698 = vsub.f32 0.0, %v1684
  %v1699 = vsub.f32 0.0, %v1686
  %v1700 = vsub.f32 0.0, %v1559
  %v1701 = vsub.f32 0.0, %v1561
  %v1702 = vsub.f32 0.0, %v1602
  %v1703 = vsub.f32 0.0, %v1604
  %v1704 = vsub.f32 0.0, %v1645
  %v1705 = vsub.f32 0.0, %v1647
  %v1706 = vsub.f32 0.0, %v1688
  %v1707 = vsub.f32 0.0, %v1690
  %v1708 = vmul.f32 %v1692, 1.442695
  %v1709 = vpow.pop %v1708
  %v1710 = vmul.f32 %v1693, 1.442695
  %v1711 = vpow.pop %v1710
  %v1712 = vmul.f32 %v1694, 1.442695
  %v1713 = vpow.pop %v1712
  %v1714 = vmul.f32 %v1695, 1.442695
  %v1715 = vpow.pop %v1714
  %v1716 = vmul.f32 %v1696, 1.442695
  %v1717 = vpow.pop %v1716
  %v1718 = vmul.f32 %v1697, 1.442695
  %v1719 = vpow.pop %v1718
  %v1720 = vmul.f32 %v1698, 1.442695
  %v1721 = vpow.pop %v1720
  %v1722 = vmul.f32 %v1699, 1.442695
  %v1723 = vpow.pop %v1722
  %v1724 = vmul.f32 %v1700, 1.442695
  %v1725 = vpow.pop %v1724
  %v1726 = vmul.f32 %v1701, 1.442695
  %v1727 = vpow.pop %v1726
  %v1728 = vmul.f32 %v1702, 1.442695
  %v1729 = vpow.pop %v1728
  %v1730 = vmul.f32 %v1703, 1.442695
  %v1731 = vpow.pop %v1730
  %v1732 = vmul.f32 %v1704, 1.442695
  %v1733 = vpow.pop %v1732
  %v1734 = vmul.f32 %v1705, 1.442695
  %v1735 = vpow.pop %v1734
  %v1736 = vmul.f32 %v1706, 1.442695
  %v1737 = vpow.pop %v1736
  %v1738 = vmul.f32 %v1707, 1.442695
  %v1739 = vpow.pop %v1738
  %v1740 = vadd.f32 %v1709, 1.0
  %v1741 = vadd.f32 %v1711, 1.0
  %v1742 = vadd.f32 %v1713, 1.0
  %v1743 = vadd.f32 %v1715, 1.0
  %v1744 = vadd.f32 %v1717, 1.0
  %v1745 = vadd.f32 %v1719, 1.0
  %v1746 = vadd.f32 %v1721, 1.0
  %v1747 = vadd.f32 %v1723, 1.0
  %v1748 = vadd.f32 %v1725, 1.0
  %v1749 = vadd.f32 %v1727, 1.0
  %v1750 = vadd.f32 %v1729, 1.0
  %v1751 = vadd.f32 %v1731, 1.0
  %v1752 = vadd.f32 %v1733, 1.0
  %v1753 = vadd.f32 %v1735, 1.0
  %v1754 = vadd.f32 %v1737, 1.0
  %v1755 = vadd.f32 %v1739, 1.0
  %v1756 = vrcp.pop %v1740
  %v1757 = vrcp.pop %v1741
  %v1758 = vrcp.pop %v1742
  %v1759 = vrcp.pop %v1743
  %v1760 = vrcp.pop %v1744
  %v1761 = vrcp.pop %v1745
  %v1762 = vrcp.pop %v1746
  %v1763 = vrcp.pop %v1747
  %v1764 = vrcp.pop %v1748
  %v1765 = vrcp.pop %v1749
  %v1766 = vrcp.pop %v1750
  %v1767 = vrcp.pop %v1751
  %v1768 = vrcp.pop %v1752
  %v1769 = vrcp.pop %v1753
  %v1770 = vrcp.pop %v1754
  %v1771 = vrcp.pop %v1755
  %v1772 = vmin.f32 %v1756, 1.0
  %v1773 = vmin.f32 %v1757, 1.0
  %v1774 = vmin.f32 %v1758, 1.0
  %v1775 = vmin.f32 %v1759, 1.0
  %v1776 = vmin.f32 %v1760, 1.0
  %v1777 = vmin.f32 %v1761, 1.0
  %v1778 = vmin.f32 %v1762, 1.0
  %v1779 = vmin.f32 %v1763, 1.0
  %v1780 = vmin.f32 %v1764, 1.0
  %v1781 = vmin.f32 %v1765, 1.0
  %v1782 = vmin.f32 %v1766, 1.0
  %v1783 = vmin.f32 %v1767, 1.0
  %v1784 = vmin.f32 %v1768, 1.0
  %v1785 = vmin.f32 %v1769, 1.0
  %v1786 = vmin.f32 %v1770, 1.0
  %v1787 = vmin.f32 %v1771, 1.0
  %1788 = vst [vmem:[%s21] sm:$0xff] %v1772
  %1789 = vst [vmem:[%s21 + $0x8] sm:$0xff] %v1773
  %1790 = vst [vmem:[%s21 + $0x10] sm:$0xff] %v1774
  %1791 = vst [vmem:[%s21 + $0x18] sm:$0xff] %v1775
  %1792 = vst [vmem:[%s21 + $0x20] sm:$0xff] %v1776
  %1793 = vst [vmem:[%s21 + $0x28] sm:$0xff] %v1777
  %1794 = vst [vmem:[%s21 + $0x30] sm:$0xff] %v1778
  %1795 = vst [vmem:[%s21 + $0x38] sm:$0xff] %v1779
  %1796 = vst [vmem:[%s21 + $0x40] sm:$0xff] %v1780
  %1797 = vst [vmem:[%s21 + $0x48] sm:$0xff] %v1781
  %1798 = vst [vmem:[%s21 + $0x50] sm:$0xff] %v1782
  %1799 = vst [vmem:[%s21 + $0x58] sm:$0xff] %v1783
  %1800 = vst [vmem:[%s21 + $0x60] sm:$0xff] %v1784
  %1801 = vst [vmem:[%s21 + $0x68] sm:$0xff] %v1785
  %1802 = vst [vmem:[%s21 + $0x70] sm:$0xff] %v1786
  %1803 = vst [vmem:[%s21 + $0x78] sm:$0xff] %v1787
  // Predicated region
  $region86: #{dense_autoencoder_forward.1} parent=0 // pred_check
    _
  $region87: #{dense_autoencoder_forward.1} parent=0 // pred_check_branch
    %1805 = sbr.rel (0) target = $region89
  $region88: #{dense_autoencoder_forward.1} parent=0 // pred_region
    _
  $region89: #{dense_autoencoder_forward.1} parent=0 // pred_fallthru
    _
  // Predicated region
  $region90: #{dense_autoencoder_forward.1} parent=0 // pred_check
    _
  $region91: #{dense_autoencoder_forward.1} parent=0 // pred_check_branch
    %1807 = sbr.rel (0) target = $region93
  $region92: #{dense_autoencoder_forward.1} parent=0 // pred_region
    _
  $region93: #{dense_autoencoder_forward.1} parent=0 // pred_fallthru
    _

</llo_original>
